<compile_context>
chip_gen: v7x
topology: tpu7x:2x2x1
jax: 0.10.0
libtpu: 0.0.40
codegen_flags: <defaults>
</compile_context>

<pallas_src>
import functools
import math

import jax
import jax.numpy as jnp
from jax import lax
from jax.experimental import pallas as pl
from jax.experimental.pallas import tpu as pltpu


def _transformer_block_kernel(
    x_ref,                      # (S, Bblk, H)   seq-first slab of tokens
    ln1_w_ref, ln1_b_ref,       # (1, H)  f32
    w_in_ref, b_in_ref,         # (H, 3H) bf16, (1, 3H) f32   fused QKV projection
    w_out_ref, b_out_ref,       # (H, H)  bf16, (1, H)  f32   attention out projection
    ln2_w_ref, ln2_b_ref,       # (1, H)  f32
    w1_ref, b1_ref,             # (H, 4H) bf16, (1, 4H) f32   FFN up
    w2_ref, b2_ref,             # (4H, H) bf16, (1, H)  f32   FFN down
    o_ref,                      # (S, Bblk, H)
    *, num_heads, eps):
    S, Bblk, H = x_ref.shape
    Dh = H // num_heads
    T = S * Bblk                                   # tokens handled this grid step
    scale = 1.0 / math.sqrt(Dh)
    cdt = jnp.bfloat16                             # MXU compute dtype

    # Token-major 2D slab (row = s * Bblk + b): every token-wise matmul gets a big M dim.
    x = x_ref[...].astype(jnp.float32).reshape(T, H)

    def layer_norm(v, w, b):
        mu = jnp.mean(v, axis=-1, keepdims=True)
        c = v - mu
        var = jnp.mean(c * c, axis=-1, keepdims=True)
        return c * lax.rsqrt(var + eps) * w + b

    # ---------------- LayerNorm1 + multi-head self-attention + residual -----------------
    xn = layer_norm(x, ln1_w_ref[...], ln1_b_ref[...])
    qkv = jnp.dot(xn.astype(cdt), w_in_ref[...],
                  preferred_element_type=jnp.float32) + b_in_ref[...]        # (T, 3H)

    q_all = (qkv[:, :H] * scale).astype(cdt)
    k_all = qkv[:, H:2 * H].astype(cdt)
    v_all = qkv[:, 2 * H:].astype(cdt)

    # Block-diagonal additive mask: tokens of different batch elements in this slab must
    # not attend to each other (a token's batch id is row % Bblk).
    if Bblk > 1:
        rows = lax.broadcasted_iota(jnp.int32, (T, T), 0)
        cols = lax.broadcasted_iota(jnp.int32, (T, T), 1)
        mask_bias = jnp.where((rows % Bblk) == (cols % Bblk),
                              jnp.float32(0.0), jnp.float32(-1e30))
    else:
        mask_bias = None

    # Short static head loop; every head still works on one lane-dense (T, T) score matrix
    # covering all Bblk batch elements at once.
    # TODO(synk): for very long sequences switch to flash-style (online-softmax) KV tiling.
    ctx_heads = []
    for h in range(num_heads):
        qh = q_all[:, h * Dh:(h + 1) * Dh]                     # (T, Dh)
        kh = k_all[:, h * Dh:(h + 1) * Dh]
        vh = v_all[:, h * Dh:(h + 1) * Dh]
        s = lax.dot_general(qh, kh, (((1,), (1,)), ((), ())),
                            preferred_element_type=jnp.float32)              # (T, T)
        if mask_bias is not None:
            s = s + mask_bias
        s = s - jnp.max(s, axis=-1, keepdims=True)
        e = jnp.exp(s)
        p = e * pl.reciprocal(jnp.sum(e, axis=-1, keepdims=True), approx=True)
        ctx_heads.append(jnp.dot(p.astype(cdt), vh,
                                 preferred_element_type=jnp.float32))        # (T, Dh)
    ctx = jnp.concatenate(ctx_heads, axis=-1)                                 # (T, H)

    attn = jnp.dot(ctx.astype(cdt), w_out_ref[...],
                   preferred_element_type=jnp.float32) + b_out_ref[...]
    # TODO(synk): train-mode dropout and key_padding_mask are not implemented; this is the
    # eval-mode / mask=None forward.
    x = x + attn                                                              # residual 1

    # ---------------- LayerNorm2 + feed-forward + residual -------------------------------
    xn2 = layer_norm(x, ln2_w_ref[...], ln2_b_ref[...])
    h1 = jnp.dot(xn2.astype(cdt), w1_ref[...],
                 preferred_element_type=jnp.float32) + b1_ref[...]
    h1 = jnp.maximum(h1, 0.0)                                                 # ReLU
    ff = jnp.dot(h1.astype(cdt), w2_ref[...],
                 preferred_element_type=jnp.float32) + b2_ref[...]

    # NOTE: with H < 128 the store is lane-masked; that ceiling is inherent to this
    # module's (.., H) output layout.
    o_ref[...] = (x + ff).reshape(S, Bblk, H).astype(o_ref.dtype)             # residual 2


def _pick_batch_block(S, B):
    """Largest multiple-of-8 divisor of B (< B, so the grid keeps >=2 parallel steps)
    giving at most ~512 tokens per step; falls back to the whole batch."""
    best = B
    for d in range(8, B, 8):
        if B % d == 0 and d * S <= 512:
            best = d
    return best


def transformer_block(x, params, *, num_heads, eps=1e-5, batch_block=None):
    """x: (S, B, H) seq-first (PyTorch nn.MultiheadAttention default layout)."""
    S, B, H = x.shape
    assert H % num_heads == 0
    if batch_block is None:
        batch_block = _pick_batch_block(S, B)
    assert B % batch_block == 0
    assert batch_block == B or batch_block % 8 == 0, \
        "batch_block must be B or a multiple of 8 (sublane-aligned block dim)"

    f32, bf16 = jnp.float32, jnp.bfloat16
    # PyTorch Linear weights are (out, in); pre-transpose once on the host so every
    # in-kernel matmul is a plain row-major bf16 MXU dot. Biases / LN params stay f32.
    ln1_w = params["ln1_w"].reshape(1, H).astype(f32)
    ln1_b = params["ln1_b"].reshape(1, H).astype(f32)
    w_in_t = params["w_in"].T.astype(bf16)            # (H, 3H)
    b_in = params["b_in"].reshape(1, 3 * H).astype(f32)
    w_out_t = params["w_out"].T.astype(bf16)          # (H, H)
    b_out = params["b_out"].reshape(1, H).astype(f32)
    ln2_w = params["ln2_w"].reshape(1, H).astype(f32)
    ln2_b = params["ln2_b"].reshape(1, H).astype(f32)
    w1_t = params["w1"].T.astype(bf16)                # (H, 4H)
    b1 = params["b1"].reshape(1, 4 * H).astype(f32)
    w2_t = params["w2"].T.astype(bf16)                # (4H, H)
    b2 = params["b2"].reshape(1, H).astype(f32)

    def rep_spec(shape):
        nd = len(shape)
        return pl.BlockSpec(shape, lambda b: (0,) * nd)   # same full block every step

    kernel = functools.partial(_transformer_block_kernel,
                               num_heads=num_heads, eps=float(eps))

    # Rough per-step VMEM estimate (double-buffered weights + activation slabs + score
    # temporaries); only raise the scoped limit when the default would not fit (large H).
    tokens = S * batch_block
    weight_bytes = 2 * (w_in_t.size + w_out_t.size + w1_t.size + w2_t.size)   # bf16
    vmem_est = (2 * weight_bytes
                + 4 * tokens * H * 4            # x / out blocks, double-buffered
                + 8 * tokens * H * 4            # qkv / ffn temporaries
                + 4 * tokens * tokens * 4)      # per-head score / prob temporaries
    vmem_limit = None
    if vmem_est > 30 * 1024 * 1024:
        vmem_limit = min(int(vmem_est * 3 // 2), 96 * 1024 * 1024)

    return pl.pallas_call(
        kernel,
        out_shape=jax.ShapeDtypeStruct((S, B, H), x.dtype),
        grid_spec=pltpu.PrefetchScalarGridSpec(
            num_scalar_prefetch=0,
            grid=(B // batch_block,),
            in_specs=[
                pl.BlockSpec((S, batch_block, H), lambda b: (0, b, 0)),   # x batch slab
                rep_spec((1, H)), rep_spec((1, H)),                       # ln1 w, b
                rep_spec((H, 3 * H)), rep_spec((1, 3 * H)),               # in_proj
                rep_spec((H, H)), rep_spec((1, H)),                       # out_proj
                rep_spec((1, H)), rep_spec((1, H)),                       # ln2 w, b
                rep_spec((H, 4 * H)), rep_spec((1, 4 * H)),               # ffn up
                rep_spec((4 * H, H)), rep_spec((1, H)),                   # ffn down
            ],
            out_specs=pl.BlockSpec((S, batch_block, H), lambda b: (0, b, 0)),
        ),
        compiler_params=pltpu.CompilerParams(
            dimension_semantics=("parallel",),   # independent batch blocks -> both v7x TCs
            vmem_limit_bytes=vmem_limit,
        ),
    )(x, ln1_w, ln1_b, w_in_t, b_in, w_out_t, b_out,
      ln2_w, ln2_b, w1_t, b1, w2_t, b2)


def _reference(x, params, *, num_heads, eps=1e-5):
    """Pure-JAX replica of the PyTorch forward (eval mode, mask=None), f32 HIGHEST."""
    S, B, H = x.shape
    Dh = H // num_heads
    hp = lax.Precision.HIGHEST

    def ln(v, w, b):
        mu = jnp.mean(v, -1, keepdims=True)
        c = v - mu
        var = jnp.mean(c * c, -1, keepdims=True)
        return c * lax.rsqrt(var + eps) * w + b

    xn = ln(x, params["ln1_w"], params["ln1_b"])
    qkv = jnp.einsum("sbh,oh->sbo", xn, params["w_in"], precision=hp) + params["b_in"]
    q, k, v = jnp.split(qkv, 3, axis=-1)

    def heads(t):  # (S,B,H) -> (B,nH,S,Dh)
        return t.reshape(S, B, num_heads, Dh).transpose(1, 2, 0, 3)

    qh, kh, vh = heads(q), heads(k), heads(v)
    scores = jnp.einsum("bnqd,bnkd->bnqk", qh, kh, precision=hp) / math.sqrt(Dh)
    attw = jax.nn.softmax(scores, axis=-1)
    ctx = jnp.einsum("bnqk,bnkd->bnqd", attw, vh, precision=hp)
    ctx = ctx.transpose(2, 0, 1, 3).reshape(S, B, H)
    attn_out = jnp.einsum("sbh,oh->sbo", ctx, params["w_out"], precision=hp) + params["b_out"]
    x = x + attn_out

    xn2 = ln(x, params["ln2_w"], params["ln2_b"])
    h1 = jnp.maximum(
        jnp.einsum("sbh,fh->sbf", xn2, params["w1"], precision=hp) + params["b1"], 0.0)
    ff = jnp.einsum("sbf,hf->sbh", h1, params["w2"], precision=hp) + params["b2"]
    return x + ff


if __name__ == "__main__":
    S, B, H, NH = 8, 16, 32, 4          # seq, batch, hidden, heads (small test shapes)
    key = jax.random.PRNGKey(0)
    ks = jax.random.split(key, 13)

    def nrm(k, shape, scale=0.1):
        return scale * jax.random.normal(k, shape, dtype=jnp.float32)

    x = jax.random.normal(ks[0], (S, B, H), dtype=jnp.float32)
    params = dict(
        ln1_w=1.0 + nrm(ks[1], (H,)),
        ln1_b=nrm(ks[2], (H,)),
        w_in=nrm(ks[3], (3 * H, H)),
        b_in=nrm(ks[4], (3 * H,)),
        w_out=nrm(ks[5], (H, H)),
        b_out=nrm(ks[6], (H,)),
        ln2_w=1.0 + nrm(ks[7], (H,)),
        ln2_b=nrm(ks[8], (H,)),
        w1=nrm(ks[9], (4 * H, H)),
        b1=nrm(ks[10], (4 * H,)),
        w2=nrm(ks[11], (H, 4 * H)),
        b2=nrm(ks[12], (H,)),
    )

    fwd = jax.jit(functools.partial(transformer_block, num_heads=NH))
    out = jax.block_until_ready(fwd(x, params))
    assert out.shape == (S, B, H)

    ref = _reference(x, params, num_heads=NH)
    max_err = float(jnp.max(jnp.abs(out - ref)))
    # bf16 MXU matmuls with f32 accumulation; LayerNorm / softmax kept in f32.
    assert jnp.allclose(out, ref, rtol=2e-2, atol=2e-2), max_err

    print("KERNEL_OK")
</pallas_src>

<mosaic_0001>
module attributes {stable_mosaic.version = 11 : i64} {
  func.func @_transformer_block_kernel(%arg0: i32, %arg1: memref<8x8x32xf32, #tpu.memory_space<vmem>>, %arg2: memref<1x32xf32, #tpu.memory_space<vmem>>, %arg3: memref<1x32xf32, #tpu.memory_space<vmem>>, %arg4: memref<32x96xbf16, #tpu.memory_space<vmem>>, %arg5: memref<1x96xf32, #tpu.memory_space<vmem>>, %arg6: memref<32x32xbf16, #tpu.memory_space<vmem>>, %arg7: memref<1x32xf32, #tpu.memory_space<vmem>>, %arg8: memref<1x32xf32, #tpu.memory_space<vmem>>, %arg9: memref<1x32xf32, #tpu.memory_space<vmem>>, %arg10: memref<32x128xbf16, #tpu.memory_space<vmem>>, %arg11: memref<1x128xf32, #tpu.memory_space<vmem>>, %arg12: memref<128x32xbf16, #tpu.memory_space<vmem>>, %arg13: memref<1x32xf32, #tpu.memory_space<vmem>>, %arg14: memref<8x8x32xf32, #tpu.memory_space<vmem>>) attributes {dimension_semantics = [#tpu.dimension_semantics<parallel>], iteration_bounds = array<i64: 2>, scalar_prefetch = 0 : i64, scratch_operands = 0 : i64, tpu.core_type = #tpu.core_type<tc>, window_params = [{transform_indices = @transform_0, window_bounds = array<i64: 8, 8, 32>}, {pipeline_mode = #tpu.pipeline_mode<synchronous>, transform_indices = @transform_1, window_bounds = array<i64: 1, 32>}, {pipeline_mode = #tpu.pipeline_mode<synchronous>, transform_indices = @transform_2, window_bounds = array<i64: 1, 32>}, {pipeline_mode = #tpu.pipeline_mode<synchronous>, transform_indices = @transform_3, window_bounds = array<i64: 32, 96>}, {pipeline_mode = #tpu.pipeline_mode<synchronous>, transform_indices = @transform_4, window_bounds = array<i64: 1, 96>}, {pipeline_mode = #tpu.pipeline_mode<synchronous>, transform_indices = @transform_5, window_bounds = array<i64: 32, 32>}, {pipeline_mode = #tpu.pipeline_mode<synchronous>, transform_indices = @transform_6, window_bounds = array<i64: 1, 32>}, {pipeline_mode = #tpu.pipeline_mode<synchronous>, transform_indices = @transform_7, window_bounds = array<i64: 1, 32>}, {pipeline_mode = #tpu.pipeline_mode<synchronous>, transform_indices = @transform_8, window_bounds = array<i64: 1, 32>}, {pipeline_mode = #tpu.pipeline_mode<synchronous>, transform_indices = @transform_9, window_bounds = array<i64: 32, 128>}, {pipeline_mode = #tpu.pipeline_mode<synchronous>, transform_indices = @transform_10, window_bounds = array<i64: 1, 128>}, {pipeline_mode = #tpu.pipeline_mode<synchronous>, transform_indices = @transform_11, window_bounds = array<i64: 128, 32>}, {pipeline_mode = #tpu.pipeline_mode<synchronous>, transform_indices = @transform_12, window_bounds = array<i64: 1, 32>}, {transform_indices = @transform_13, window_bounds = array<i64: 8, 8, 32>}]} {
    %c0 = arith.constant 0 : index
    %c0_0 = arith.constant 0 : index
    %c0_1 = arith.constant 0 : index
    %0 = vector.load %arg1[%c0, %c0_0, %c0_1] : memref<8x8x32xf32, #tpu.memory_space<vmem>>, vector<8x8x32xf32>
    %1 = vector.shape_cast %0 : vector<8x8x32xf32> to vector<64x32xf32>
    %c0_2 = arith.constant 0 : index
    %c0_3 = arith.constant 0 : index
    %2 = vector.load %arg2[%c0_2, %c0_3] : memref<1x32xf32, #tpu.memory_space<vmem>>, vector<1x32xf32>
    %c0_4 = arith.constant 0 : index
    %c0_5 = arith.constant 0 : index
    %3 = vector.load %arg3[%c0_4, %c0_5] : memref<1x32xf32, #tpu.memory_space<vmem>>, vector<1x32xf32>
    %cst = arith.constant dense<0.000000e+00> : vector<64xf32>
    %4 = vector.multi_reduction <add>, %1, %cst [1] : vector<64x32xf32> to vector<64xf32>
    %5 = vector.shape_cast %4 : vector<64xf32> to vector<64x1xf32>
    %cst_6 = arith.constant 3.200000e+01 : f32
    %6 = vector.broadcast %cst_6 : f32 to vector<64x1xf32>
    %7 = arith.divf %5, %6 : vector<64x1xf32>
    %8 = vector.broadcast %7 : vector<64x1xf32> to vector<64x32xf32>
    %9 = arith.subf %1, %8 : vector<64x32xf32>
    %10 = arith.mulf %9, %9 : vector<64x32xf32>
    %cst_7 = arith.constant dense<0.000000e+00> : vector<64xf32>
    %11 = vector.multi_reduction <add>, %10, %cst_7 [1] : vector<64x32xf32> to vector<64xf32>
    %12 = vector.shape_cast %11 : vector<64xf32> to vector<64x1xf32>
    %cst_8 = arith.constant 3.200000e+01 : f32
    %13 = vector.broadcast %cst_8 : f32 to vector<64x1xf32>
    %14 = arith.divf %12, %13 : vector<64x1xf32>
    %cst_9 = arith.constant 9.99999974E-6 : f32
    %15 = vector.broadcast %cst_9 : f32 to vector<64x1xf32>
    %16 = arith.addf %14, %15 : vector<64x1xf32>
    %17 = math.rsqrt %16 : vector<64x1xf32>
    %18 = vector.broadcast %17 : vector<64x1xf32> to vector<64x32xf32>
    %19 = arith.mulf %9, %18 : vector<64x32xf32>
    %20 = vector.broadcast %2 : vector<1x32xf32> to vector<64x32xf32>
    %21 = arith.mulf %19, %20 : vector<64x32xf32>
    %22 = vector.broadcast %3 : vector<1x32xf32> to vector<64x32xf32>
    %23 = arith.addf %21, %22 : vector<64x32xf32>
    %24 = arith.truncf %23 : vector<64x32xf32> to vector<64x32xbf16>
    %c0_10 = arith.constant 0 : index
    %c0_11 = arith.constant 0 : index
    %25 = vector.load %arg4[%c0_10, %c0_11] : memref<32x96xbf16, #tpu.memory_space<vmem>>, vector<32x96xbf16>
    %cst_12 = arith.constant dense<0.000000e+00> : vector<64x96xf32>
    %26 = tpu.matmul %24, %25, %cst_12 {dimension_numbers = #tpu.dot_dimension_numbers<[1], [0], [0], [1], [0, 0, 1, 1], [], []>} : vector<64x32xbf16>, vector<32x96xbf16>, vector<64x96xf32> -> vector<64x96xf32>
    %c0_13 = arith.constant 0 : index
    %c0_14 = arith.constant 0 : index
    %27 = vector.load %arg5[%c0_13, %c0_14] : memref<1x96xf32, #tpu.memory_space<vmem>>, vector<1x96xf32>
    %28 = vector.broadcast %27 : vector<1x96xf32> to vector<64x96xf32>
    %29 = arith.addf %26, %28 : vector<64x96xf32>
    %30 = vector.extract_strided_slice %29 {offsets = [0, 0], sizes = [64, 32], strides = [1, 1]} : vector<64x96xf32> to vector<64x32xf32>
    %cst_15 = arith.constant 0.353553385 : f32
    %31 = vector.broadcast %cst_15 : f32 to vector<64x32xf32>
    %32 = arith.mulf %30, %31 : vector<64x32xf32>
    %33 = arith.truncf %32 : vector<64x32xf32> to vector<64x32xbf16>
    %34 = vector.extract_strided_slice %29 {offsets = [0, 32], sizes = [64, 32], strides = [1, 1]} : vector<64x96xf32> to vector<64x32xf32>
    %35 = arith.truncf %34 : vector<64x32xf32> to vector<64x32xbf16>
    %36 = vector.extract_strided_slice %29 {offsets = [0, 64], sizes = [64, 32], strides = [1, 1]} : vector<64x96xf32> to vector<64x32xf32>
    %37 = arith.truncf %36 : vector<64x32xf32> to vector<64x32xbf16>
    %38 = tpu.iota {dimensions = array<i32: 0>} : vector<64x64xi32>
    %39 = tpu.iota {dimensions = array<i32: 1>} : vector<64x64xi32>
    %c8_i32 = arith.constant 8 : i32
    %c0_i32 = arith.constant 0 : i32
    %40 = arith.cmpi eq, %c8_i32, %c0_i32 : i32
    %c1_i32 = arith.constant 1 : i32
    %41 = arith.select %40, %c1_i32, %c8_i32 : i32
    %42 = vector.broadcast %41 : i32 to vector<64x64xi32>
    %43 = arith.remsi %38, %42 : vector<64x64xi32>
    %c0_i32_16 = arith.constant 0 : i32
    %44 = vector.broadcast %c0_i32_16 : i32 to vector<64x64xi32>
    %45 = arith.cmpi ne, %43, %44 : vector<64x64xi32>
    %c0_i32_17 = arith.constant 0 : i32
    %46 = vector.broadcast %c0_i32_17 : i32 to vector<64x64xi32>
    %47 = arith.cmpi slt, %43, %46 : vector<64x64xi32>
    %c0_i32_18 = arith.constant 0 : i32
    %48 = arith.cmpi slt, %41, %c0_i32_18 : i32
    %49 = vector.broadcast %48 : i1 to vector<64x64xi1>
    %50 = vector.broadcast %49 : vector<64x64xi1> to vector<64x64xi1>
    %51 = arith.xori %47, %50 : vector<64x64xi1>
    %52 = arith.andi %51, %45 : vector<64x64xi1>
    %53 = vector.broadcast %41 : i32 to vector<64x64xi32>
    %54 = arith.addi %43, %53 : vector<64x64xi32>
    %55 = arith.select %52, %54, %43 : vector<64x64xi1>, vector<64x64xi32>
    %c8_i32_19 = arith.constant 8 : i32
    %c0_i32_20 = arith.constant 0 : i32
    %56 = arith.cmpi eq, %c8_i32_19, %c0_i32_20 : i32
    %c1_i32_21 = arith.constant 1 : i32
    %57 = arith.select %56, %c1_i32_21, %c8_i32_19 : i32
    %58 = vector.broadcast %57 : i32 to vector<64x64xi32>
    %59 = arith.remsi %39, %58 : vector<64x64xi32>
    %c0_i32_22 = arith.constant 0 : i32
    %60 = vector.broadcast %c0_i32_22 : i32 to vector<64x64xi32>
    %61 = arith.cmpi ne, %59, %60 : vector<64x64xi32>
    %c0_i32_23 = arith.constant 0 : i32
    %62 = vector.broadcast %c0_i32_23 : i32 to vector<64x64xi32>
    %63 = arith.cmpi slt, %59, %62 : vector<64x64xi32>
    %c0_i32_24 = arith.constant 0 : i32
    %64 = arith.cmpi slt, %57, %c0_i32_24 : i32
    %65 = vector.broadcast %64 : i1 to vector<64x64xi1>
    %66 = vector.broadcast %65 : vector<64x64xi1> to vector<64x64xi1>
    %67 = arith.xori %63, %66 : vector<64x64xi1>
    %68 = arith.andi %67, %61 : vector<64x64xi1>
    %69 = vector.broadcast %57 : i32 to vector<64x64xi32>
    %70 = arith.addi %59, %69 : vector<64x64xi32>
    %71 = arith.select %68, %70, %59 : vector<64x64xi1>, vector<64x64xi32>
    %72 = arith.cmpi eq, %55, %71 : vector<64x64xi32>
    %cst_25 = arith.constant 0.000000e+00 : f32
    %cst_26 = arith.constant -1.000000e+30 : f32
    %73 = vector.broadcast %cst_25 : f32 to vector<64x64xf32>
    %74 = vector.broadcast %cst_26 : f32 to vector<64x64xf32>
    %75 = arith.select %72, %73, %74 : vector<64x64xi1>, vector<64x64xf32>
    %76 = vector.extract_strided_slice %33 {offsets = [0, 0], sizes = [64, 8], strides = [1, 1]} : vector<64x32xbf16> to vector<64x8xbf16>
    %77 = vector.extract_strided_slice %35 {offsets = [0, 0], sizes = [64, 8], strides = [1, 1]} : vector<64x32xbf16> to vector<64x8xbf16>
    %78 = vector.extract_strided_slice %37 {offsets = [0, 0], sizes = [64, 8], strides = [1, 1]} : vector<64x32xbf16> to vector<64x8xbf16>
    %cst_27 = arith.constant dense<0.000000e+00> : vector<64x64xf32>
    %79 = tpu.matmul %76, %77, %cst_27 {dimension_numbers = #tpu.dot_dimension_numbers<[1], [1], [0], [0], [0, 0, 1, 0], [], []>} : vector<64x8xbf16>, vector<64x8xbf16>, vector<64x64xf32> -> vector<64x64xf32>
    %80 = arith.addf %79, %75 : vector<64x64xf32>
    %cst_28 = arith.constant dense<0xFF800000> : vector<64xf32>
    %81 = vector.multi_reduction <maximumf>, %80, %cst_28 [1] : vector<64x64xf32> to vector<64xf32>
    %82 = vector.shape_cast %81 : vector<64xf32> to vector<64x1xf32>
    %83 = vector.broadcast %82 : vector<64x1xf32> to vector<64x64xf32>
    %84 = arith.subf %80, %83 : vector<64x64xf32>
    %85 = math.exp %84 : vector<64x64xf32>
    %cst_29 = arith.constant dense<0.000000e+00> : vector<64xf32>
    %86 = vector.multi_reduction <add>, %85, %cst_29 [1] : vector<64x64xf32> to vector<64xf32>
    %87 = vector.shape_cast %86 : vector<64xf32> to vector<64x1xf32>
    %88 = tpu.reciprocal %87 {approx = true} : vector<64x1xf32> -> vector<64x1xf32>
    %89 = vector.broadcast %88 : vector<64x1xf32> to vector<64x64xf32>
    %90 = arith.mulf %85, %89 : vector<64x64xf32>
    %91 = arith.truncf %90 : vector<64x64xf32> to vector<64x64xbf16>
    %cst_30 = arith.constant dense<0.000000e+00> : vector<64x8xf32>
    %92 = tpu.matmul %91, %78, %cst_30 {dimension_numbers = #tpu.dot_dimension_numbers<[1], [0], [0], [1], [0, 0, 1, 1], [], []>} : vector<64x64xbf16>, vector<64x8xbf16>, vector<64x8xf32> -> vector<64x8xf32>
    %93 = vector.extract_strided_slice %33 {offsets = [0, 8], sizes = [64, 8], strides = [1, 1]} : vector<64x32xbf16> to vector<64x8xbf16>
    %94 = vector.extract_strided_slice %35 {offsets = [0, 8], sizes = [64, 8], strides = [1, 1]} : vector<64x32xbf16> to vector<64x8xbf16>
    %95 = vector.extract_strided_slice %37 {offsets = [0, 8], sizes = [64, 8], strides = [1, 1]} : vector<64x32xbf16> to vector<64x8xbf16>
    %cst_31 = arith.constant dense<0.000000e+00> : vector<64x64xf32>
    %96 = tpu.matmul %93, %94, %cst_31 {dimension_numbers = #tpu.dot_dimension_numbers<[1], [1], [0], [0], [0, 0, 1, 0], [], []>} : vector<64x8xbf16>, vector<64x8xbf16>, vector<64x64xf32> -> vector<64x64xf32>
    %97 = arith.addf %96, %75 : vector<64x64xf32>
    %cst_32 = arith.constant dense<0xFF800000> : vector<64xf32>
    %98 = vector.multi_reduction <maximumf>, %97, %cst_32 [1] : vector<64x64xf32> to vector<64xf32>
    %99 = vector.shape_cast %98 : vector<64xf32> to vector<64x1xf32>
    %100 = vector.broadcast %99 : vector<64x1xf32> to vector<64x64xf32>
    %101 = arith.subf %97, %100 : vector<64x64xf32>
    %102 = math.exp %101 : vector<64x64xf32>
    %cst_33 = arith.constant dense<0.000000e+00> : vector<64xf32>
    %103 = vector.multi_reduction <add>, %102, %cst_33 [1] : vector<64x64xf32> to vector<64xf32>
    %104 = vector.shape_cast %103 : vector<64xf32> to vector<64x1xf32>
    %105 = tpu.reciprocal %104 {approx = true} : vector<64x1xf32> -> vector<64x1xf32>
    %106 = vector.broadcast %105 : vector<64x1xf32> to vector<64x64xf32>
    %107 = arith.mulf %102, %106 : vector<64x64xf32>
    %108 = arith.truncf %107 : vector<64x64xf32> to vector<64x64xbf16>
    %cst_34 = arith.constant dense<0.000000e+00> : vector<64x8xf32>
    %109 = tpu.matmul %108, %95, %cst_34 {dimension_numbers = #tpu.dot_dimension_numbers<[1], [0], [0], [1], [0, 0, 1, 1], [], []>} : vector<64x64xbf16>, vector<64x8xbf16>, vector<64x8xf32> -> vector<64x8xf32>
    %110 = vector.extract_strided_slice %33 {offsets = [0, 16], sizes = [64, 8], strides = [1, 1]} : vector<64x32xbf16> to vector<64x8xbf16>
    %111 = vector.extract_strided_slice %35 {offsets = [0, 16], sizes = [64, 8], strides = [1, 1]} : vector<64x32xbf16> to vector<64x8xbf16>
    %112 = vector.extract_strided_slice %37 {offsets = [0, 16], sizes = [64, 8], strides = [1, 1]} : vector<64x32xbf16> to vector<64x8xbf16>
    %cst_35 = arith.constant dense<0.000000e+00> : vector<64x64xf32>
    %113 = tpu.matmul %110, %111, %cst_35 {dimension_numbers = #tpu.dot_dimension_numbers<[1], [1], [0], [0], [0, 0, 1, 0], [], []>} : vector<64x8xbf16>, vector<64x8xbf16>, vector<64x64xf32> -> vector<64x64xf32>
    %114 = arith.addf %113, %75 : vector<64x64xf32>
    %cst_36 = arith.constant dense<0xFF800000> : vector<64xf32>
    %115 = vector.multi_reduction <maximumf>, %114, %cst_36 [1] : vector<64x64xf32> to vector<64xf32>
    %116 = vector.shape_cast %115 : vector<64xf32> to vector<64x1xf32>
    %117 = vector.broadcast %116 : vector<64x1xf32> to vector<64x64xf32>
    %118 = arith.subf %114, %117 : vector<64x64xf32>
    %119 = math.exp %118 : vector<64x64xf32>
    %cst_37 = arith.constant dense<0.000000e+00> : vector<64xf32>
    %120 = vector.multi_reduction <add>, %119, %cst_37 [1] : vector<64x64xf32> to vector<64xf32>
    %121 = vector.shape_cast %120 : vector<64xf32> to vector<64x1xf32>
    %122 = tpu.reciprocal %121 {approx = true} : vector<64x1xf32> -> vector<64x1xf32>
    %123 = vector.broadcast %122 : vector<64x1xf32> to vector<64x64xf32>
    %124 = arith.mulf %119, %123 : vector<64x64xf32>
    %125 = arith.truncf %124 : vector<64x64xf32> to vector<64x64xbf16>
    %cst_38 = arith.constant dense<0.000000e+00> : vector<64x8xf32>
    %126 = tpu.matmul %125, %112, %cst_38 {dimension_numbers = #tpu.dot_dimension_numbers<[1], [0], [0], [1], [0, 0, 1, 1], [], []>} : vector<64x64xbf16>, vector<64x8xbf16>, vector<64x8xf32> -> vector<64x8xf32>
    %127 = vector.extract_strided_slice %33 {offsets = [0, 24], sizes = [64, 8], strides = [1, 1]} : vector<64x32xbf16> to vector<64x8xbf16>
    %128 = vector.extract_strided_slice %35 {offsets = [0, 24], sizes = [64, 8], strides = [1, 1]} : vector<64x32xbf16> to vector<64x8xbf16>
    %129 = vector.extract_strided_slice %37 {offsets = [0, 24], sizes = [64, 8], strides = [1, 1]} : vector<64x32xbf16> to vector<64x8xbf16>
    %cst_39 = arith.constant dense<0.000000e+00> : vector<64x64xf32>
    %130 = tpu.matmul %127, %128, %cst_39 {dimension_numbers = #tpu.dot_dimension_numbers<[1], [1], [0], [0], [0, 0, 1, 0], [], []>} : vector<64x8xbf16>, vector<64x8xbf16>, vector<64x64xf32> -> vector<64x64xf32>
    %131 = arith.addf %130, %75 : vector<64x64xf32>
    %cst_40 = arith.constant dense<0xFF800000> : vector<64xf32>
    %132 = vector.multi_reduction <maximumf>, %131, %cst_40 [1] : vector<64x64xf32> to vector<64xf32>
    %133 = vector.shape_cast %132 : vector<64xf32> to vector<64x1xf32>
    %134 = vector.broadcast %133 : vector<64x1xf32> to vector<64x64xf32>
    %135 = arith.subf %131, %134 : vector<64x64xf32>
    %136 = math.exp %135 : vector<64x64xf32>
    %cst_41 = arith.constant dense<0.000000e+00> : vector<64xf32>
    %137 = vector.multi_reduction <add>, %136, %cst_41 [1] : vector<64x64xf32> to vector<64xf32>
    %138 = vector.shape_cast %137 : vector<64xf32> to vector<64x1xf32>
    %139 = tpu.reciprocal %138 {approx = true} : vector<64x1xf32> -> vector<64x1xf32>
    %140 = vector.broadcast %139 : vector<64x1xf32> to vector<64x64xf32>
    %141 = arith.mulf %136, %140 : vector<64x64xf32>
    %142 = arith.truncf %141 : vector<64x64xf32> to vector<64x64xbf16>
    %cst_42 = arith.constant dense<0.000000e+00> : vector<64x8xf32>
    %143 = tpu.matmul %142, %129, %cst_42 {dimension_numbers = #tpu.dot_dimension_numbers<[1], [0], [0], [1], [0, 0, 1, 1], [], []>} : vector<64x64xbf16>, vector<64x8xbf16>, vector<64x8xf32> -> vector<64x8xf32>
    %144 = tpu.concatenate %92, %109, %126, %143 in 1 : vector<64x8xf32>, vector<64x8xf32>, vector<64x8xf32>, vector<64x8xf32> -> vector<64x32xf32>
    %145 = arith.truncf %144 : vector<64x32xf32> to vector<64x32xbf16>
    %c0_43 = arith.constant 0 : index
    %c0_44 = arith.constant 0 : index
    %146 = vector.load %arg6[%c0_43, %c0_44] : memref<32x32xbf16, #tpu.memory_space<vmem>>, vector<32x32xbf16>
    %cst_45 = arith.constant dense<0.000000e+00> : vector<64x32xf32>
    %147 = tpu.matmul %145, %146, %cst_45 {dimension_numbers = #tpu.dot_dimension_numbers<[1], [0], [0], [1], [0, 0, 1, 1], [], []>} : vector<64x32xbf16>, vector<32x32xbf16>, vector<64x32xf32> -> vector<64x32xf32>
    %c0_46 = arith.constant 0 : index
    %c0_47 = arith.constant 0 : index
    %148 = vector.load %arg7[%c0_46, %c0_47] : memref<1x32xf32, #tpu.memory_space<vmem>>, vector<1x32xf32>
    %149 = vector.broadcast %148 : vector<1x32xf32> to vector<64x32xf32>
    %150 = arith.addf %147, %149 : vector<64x32xf32>
    %151 = arith.addf %1, %150 : vector<64x32xf32>
    %c0_48 = arith.constant 0 : index
    %c0_49 = arith.constant 0 : index
    %152 = vector.load %arg8[%c0_48, %c0_49] : memref<1x32xf32, #tpu.memory_space<vmem>>, vector<1x32xf32>
    %c0_50 = arith.constant 0 : index
    %c0_51 = arith.constant 0 : index
    %153 = vector.load %arg9[%c0_50, %c0_51] : memref<1x32xf32, #tpu.memory_space<vmem>>, vector<1x32xf32>
    %cst_52 = arith.constant dense<0.000000e+00> : vector<64xf32>
    %154 = vector.multi_reduction <add>, %151, %cst_52 [1] : vector<64x32xf32> to vector<64xf32>
    %155 = vector.shape_cast %154 : vector<64xf32> to vector<64x1xf32>
    %cst_53 = arith.constant 3.200000e+01 : f32
    %156 = vector.broadcast %cst_53 : f32 to vector<64x1xf32>
    %157 = arith.divf %155, %156 : vector<64x1xf32>
    %158 = vector.broadcast %157 : vector<64x1xf32> to vector<64x32xf32>
    %159 = arith.subf %151, %158 : vector<64x32xf32>
    %160 = arith.mulf %159, %159 : vector<64x32xf32>
    %cst_54 = arith.constant dense<0.000000e+00> : vector<64xf32>
    %161 = vector.multi_reduction <add>, %160, %cst_54 [1] : vector<64x32xf32> to vector<64xf32>
    %162 = vector.shape_cast %161 : vector<64xf32> to vector<64x1xf32>
    %cst_55 = arith.constant 3.200000e+01 : f32
    %163 = vector.broadcast %cst_55 : f32 to vector<64x1xf32>
    %164 = arith.divf %162, %163 : vector<64x1xf32>
    %cst_56 = arith.constant 9.99999974E-6 : f32
    %165 = vector.broadcast %cst_56 : f32 to vector<64x1xf32>
    %166 = arith.addf %164, %165 : vector<64x1xf32>
    %167 = math.rsqrt %166 : vector<64x1xf32>
    %168 = vector.broadcast %167 : vector<64x1xf32> to vector<64x32xf32>
    %169 = arith.mulf %159, %168 : vector<64x32xf32>
    %170 = vector.broadcast %152 : vector<1x32xf32> to vector<64x32xf32>
    %171 = arith.mulf %169, %170 : vector<64x32xf32>
    %172 = vector.broadcast %153 : vector<1x32xf32> to vector<64x32xf32>
    %173 = arith.addf %171, %172 : vector<64x32xf32>
    %174 = arith.truncf %173 : vector<64x32xf32> to vector<64x32xbf16>
    %c0_57 = arith.constant 0 : index
    %c0_58 = arith.constant 0 : index
    %175 = vector.load %arg10[%c0_57, %c0_58] : memref<32x128xbf16, #tpu.memory_space<vmem>>, vector<32x128xbf16>
    %cst_59 = arith.constant dense<0.000000e+00> : vector<64x128xf32>
    %176 = tpu.matmul %174, %175, %cst_59 {dimension_numbers = #tpu.dot_dimension_numbers<[1], [0], [0], [1], [0, 0, 1, 1], [], []>} : vector<64x32xbf16>, vector<32x128xbf16>, vector<64x128xf32> -> vector<64x128xf32>
    %c0_60 = arith.constant 0 : index
    %c0_61 = arith.constant 0 : index
    %177 = vector.load %arg11[%c0_60, %c0_61] : memref<1x128xf32, #tpu.memory_space<vmem>>, vector<1x128xf32>
    %178 = vector.broadcast %177 : vector<1x128xf32> to vector<64x128xf32>
    %179 = arith.addf %176, %178 : vector<64x128xf32>
    %cst_62 = arith.constant 0.000000e+00 : f32
    %180 = vector.broadcast %cst_62 : f32 to vector<64x128xf32>
    %181 = arith.maximumf %179, %180 : vector<64x128xf32>
    %182 = arith.truncf %181 : vector<64x128xf32> to vector<64x128xbf16>
    %c0_63 = arith.constant 0 : index
    %c0_64 = arith.constant 0 : index
    %183 = vector.load %arg12[%c0_63, %c0_64] : memref<128x32xbf16, #tpu.memory_space<vmem>>, vector<128x32xbf16>
    %cst_65 = arith.constant dense<0.000000e+00> : vector<64x32xf32>
    %184 = tpu.matmul %182, %183, %cst_65 {dimension_numbers = #tpu.dot_dimension_numbers<[1], [0], [0], [1], [0, 0, 1, 1], [], []>} : vector<64x128xbf16>, vector<128x32xbf16>, vector<64x32xf32> -> vector<64x32xf32>
    %c0_66 = arith.constant 0 : index
    %c0_67 = arith.constant 0 : index
    %185 = vector.load %arg13[%c0_66, %c0_67] : memref<1x32xf32, #tpu.memory_space<vmem>>, vector<1x32xf32>
    %186 = vector.broadcast %185 : vector<1x32xf32> to vector<64x32xf32>
    %187 = arith.addf %184, %186 : vector<64x32xf32>
    %188 = arith.addf %151, %187 : vector<64x32xf32>
    %189 = vector.shape_cast %188 : vector<64x32xf32> to vector<8x8x32xf32>
    %c0_68 = arith.constant 0 : index
    %c0_69 = arith.constant 0 : index
    %c0_70 = arith.constant 0 : index
    %190 = vector.load %arg14[%c0_68, %c0_69, %c0_70] : memref<8x8x32xf32, #tpu.memory_space<vmem>>, vector<8x8x32xf32>
    tpu.vector_store %arg14[%c0_68, %c0_69, %c0_70], %189 {strides = array<i32>} : memref<8x8x32xf32, #tpu.memory_space<vmem>>, vector<8x8x32xf32>,
    return
  }
  func.func @transform_0(%arg0: i32) -> (i32, i32, i32) {
    %c0_i32 = arith.constant 0 : i32
    %c0_i32_0 = arith.constant 0 : i32
    %c0_i32_1 = arith.constant 0 : i32
    return %c0_i32, %arg0, %c0_i32_0 : i32, i32, i32
  }
  func.func @transform_1(%arg0: i32) -> (i32, i32) {
    %c0_i32 = arith.constant 0 : i32
    %c0_i32_0 = arith.constant 0 : i32
    %c0_i32_1 = arith.constant 0 : i32
    return %c0_i32, %c0_i32_0 : i32, i32
  }
  func.func @transform_2(%arg0: i32) -> (i32, i32) {
    %c0_i32 = arith.constant 0 : i32
    %c0_i32_0 = arith.constant 0 : i32
    %c0_i32_1 = arith.constant 0 : i32
    return %c0_i32, %c0_i32_0 : i32, i32
  }
  func.func @transform_3(%arg0: i32) -> (i32, i32) {
    %c0_i32 = arith.constant 0 : i32
    %c0_i32_0 = arith.constant 0 : i32
    %c0_i32_1 = arith.constant 0 : i32
    return %c0_i32, %c0_i32_0 : i32, i32
  }
  func.func @transform_4(%arg0: i32) -> (i32, i32) {
    %c0_i32 = arith.constant 0 : i32
    %c0_i32_0 = arith.constant 0 : i32
    %c0_i32_1 = arith.constant 0 : i32
    return %c0_i32, %c0_i32_0 : i32, i32
  }
  func.func @transform_5(%arg0: i32) -> (i32, i32) {
    %c0_i32 = arith.constant 0 : i32
    %c0_i32_0 = arith.constant 0 : i32
    %c0_i32_1 = arith.constant 0 : i32
    return %c0_i32, %c0_i32_0 : i32, i32
  }
  func.func @transform_6(%arg0: i32) -> (i32, i32) {
    %c0_i32 = arith.constant 0 : i32
    %c0_i32_0 = arith.constant 0 : i32
    %c0_i32_1 = arith.constant 0 : i32
    return %c0_i32, %c0_i32_0 : i32, i32
  }
  func.func @transform_7(%arg0: i32) -> (i32, i32) {
    %c0_i32 = arith.constant 0 : i32
    %c0_i32_0 = arith.constant 0 : i32
    %c0_i32_1 = arith.constant 0 : i32
    return %c0_i32, %c0_i32_0 : i32, i32
  }
  func.func @transform_8(%arg0: i32) -> (i32, i32) {
    %c0_i32 = arith.constant 0 : i32
    %c0_i32_0 = arith.constant 0 : i32
    %c0_i32_1 = arith.constant 0 : i32
    return %c0_i32, %c0_i32_0 : i32, i32
  }
  func.func @transform_9(%arg0: i32) -> (i32, i32) {
    %c0_i32 = arith.constant 0 : i32
    %c0_i32_0 = arith.constant 0 : i32
    %c0_i32_1 = arith.constant 0 : i32
    return %c0_i32, %c0_i32_0 : i32, i32
  }
  func.func @transform_10(%arg0: i32) -> (i32, i32) {
    %c0_i32 = arith.constant 0 : i32
    %c0_i32_0 = arith.constant 0 : i32
    %c0_i32_1 = arith.constant 0 : i32
    return %c0_i32, %c0_i32_0 : i32, i32
  }
  func.func @transform_11(%arg0: i32) -> (i32, i32) {
    %c0_i32 = arith.constant 0 : i32
    %c0_i32_0 = arith.constant 0 : i32
    %c0_i32_1 = arith.constant 0 : i32
    return %c0_i32, %c0_i32_0 : i32, i32
  }
  func.func @transform_12(%arg0: i32) -> (i32, i32) {
    %c0_i32 = arith.constant 0 : i32
    %c0_i32_0 = arith.constant 0 : i32
    %c0_i32_1 = arith.constant 0 : i32
    return %c0_i32, %c0_i32_0 : i32, i32
  }
  func.func @transform_13(%arg0: i32) -> (i32, i32, i32) {
    %c0_i32 = arith.constant 0 : i32
    %c0_i32_0 = arith.constant 0 : i32
    %c0_i32_1 = arith.constant 0 : i32
    return %c0_i32, %arg0, %c0_i32_0 : i32, i32, i32
  }
}

</mosaic_0001>

<llo_original>
// kernel: transformer_block.1
$region0: #{transformer_block.1}
  #allocation0 [shape = 'u32[]', space=smem, size = 0x4, offset = 0x4, fixed_abs, tag = 'smem constant byte address 0x4 - core index']
  #allocation1 [shape = 'u32[144,128]{1,0:T(1,128)}', space=vmem, size = 0x12000, scoped, tag = 'internal scratch']
  %s0 = inlined_call_operand.vmem [shape: f32[8,16,32], index: 0, kind: input, shape index: {}]
  %s1 = inlined_call_operand.vmem [shape: f32[1,32], index: 1, kind: input, shape index: {}]
  %s2 = inlined_call_operand.vmem [shape: f32[1,32], index: 2, kind: input, shape index: {}]
  %s3 = inlined_call_operand.vmem [shape: bf16[32,96], index: 3, kind: input, shape index: {}]
  %s4 = inlined_call_operand.vmem [shape: f32[1,96], index: 4, kind: input, shape index: {}]
  %s5 = inlined_call_operand.vmem [shape: bf16[32,32], index: 5, kind: input, shape index: {}]
  %s6 = inlined_call_operand.vmem [shape: f32[1,32], index: 6, kind: input, shape index: {}]
  %s7 = inlined_call_operand.vmem [shape: f32[1,32], index: 7, kind: input, shape index: {}]
  %s8 = inlined_call_operand.vmem [shape: f32[1,32], index: 8, kind: input, shape index: {}]
  %s9 = inlined_call_operand.vmem [shape: bf16[32,128], index: 9, kind: input, shape index: {}]
  %s10 = inlined_call_operand.vmem [shape: f32[1,128], index: 10, kind: input, shape index: {}]
  %s11 = inlined_call_operand.vmem [shape: bf16[128,32], index: 11, kind: input, shape index: {}]
  %s12 = inlined_call_operand.vmem [shape: f32[1,32], index: 12, kind: input, shape index: {}]
  %s13 = inlined_call_operand.hbm [shape: f32[8,16,32], index: 13, kind: output, shape index: {}]
  %s14 = sld [smem:[#allocation0]]
  $region123: #{transformer_block.1} parent=0
    _
  %s16 = ssub.s32 1, %s14
  %s17 = scalar_select 0, %s16, %s14
  $region1: #{transformer_block.1} parent=0
    #allocation2 [shape = 'u8[65536]{0}', space=vmem, size = 0x10000, scoped, tag = 'input window, operand 0']
    #allocation3 [shape = 'u8[65536]{0}', space=vmem, size = 0x10000, scoped, tag = 'output window, operand 0']
    #allocation4 [shape = 's32[2]{0}', space=sflag, size = 0x8, scoped, tag = 'scoped memory for transformer_block.1']
    %18 = vsyncpa [#allocation4], 0
    %s19 = scalar_lea.sflag [#allocation4], 1
    %20 = vsyncpa %s19, 0
    loop: start=0, step=1, limit=4
    $region2: #{transformer_block.1} parent=1 // loop_pre_header
      _
    $region3: #{transformer_block.1} parent=1 // loop_header
      %s22 = sphi 0, %s26
      %p23 = scmp.ge.s32.totalorder %s22, 4
      %s32 = sphi 0, %s34
      %s35 = sphi 0, %s32
      %s36 = sphi 0, %s35
      %s52 = sphi 0, %s36
      %s56 = sphi 0, %s56
      %s58 = sphi 0, %s56
      %s59 = sphi 0, %s58
      %s73 = sphi 0, %s59
      %s77 = sphi 0, %s77
      %s79 = sphi 0, %s77
      %s80 = sphi 0, %s79
      %s94 = sphi 0, %s80
      %s98 = sphi 0, %s98
      %s100 = sphi 0, %s98
      %s101 = sphi 0, %s100
      %s115 = sphi 0, %s101
      %s119 = sphi 0, %s119
      %s121 = sphi 0, %s119
      %s122 = sphi 0, %s121
      %s136 = sphi 0, %s122
      %s140 = sphi 0, %s140
      %s142 = sphi 0, %s140
      %s143 = sphi 0, %s142
      %s157 = sphi 0, %s143
      %s161 = sphi 0, %s161
      %s163 = sphi 0, %s161
      %s164 = sphi 0, %s163
      %s178 = sphi 0, %s164
      %s182 = sphi 0, %s182
      %s184 = sphi 0, %s182
      %s185 = sphi 0, %s184
      %s199 = sphi 0, %s185
      %s203 = sphi 0, %s203
      %s205 = sphi 0, %s203
      %s206 = sphi 0, %s205
      %s220 = sphi 0, %s206
      %s224 = sphi 0, %s224
      %s226 = sphi 0, %s224
      %s227 = sphi 0, %s226
      %s241 = sphi 0, %s227
      %s245 = sphi 0, %s245
      %s247 = sphi 0, %s245
      %s248 = sphi 0, %s247
      %s262 = sphi 0, %s248
      %s266 = sphi 0, %s266
      %s268 = sphi 0, %s266
      %s269 = sphi 0, %s268
      %s283 = sphi 0, %s269
      %s287 = sphi 0, %s287
      %s289 = sphi 0, %s287
      %s290 = sphi 0, %s289
      %s304 = sphi 0, %s290
      %s310 = sphi 0, %s312
      %s313 = sphi 0, %s310
      %s314 = sphi 0, %s313
      %s330 = sphi 0, %s314
    $region4: #{transformer_block.1} parent=1 // loop_header_branch
      %25 = sbr.rel (%p23) target = $region8
    $region5: #{transformer_block.1} parent=1 // loop_body
      %s27 = ssub.s32 %s22, 1
      %s28 = ssub.s32 %s22, 2
      %s29 = sadd.s32 %s22, 1
      %s30 = ssub.s32 %s22, %s29
      %p31 = scmp.eq.s32.totalorder %s30, 0
      %s33 = sadd.s32 %s32, 1
      %s34 = scalar_select %p31, %s32, %s33
      %p37 = pneg %p31
      %p38 = scmp.eq.s32.totalorder %s22, 1
      %p39 = por %p37, %p38
      %p40 = scmp.ne.s32.totalorder %s32, %s35
      %p41 = scmp.eq.s32.totalorder %s22, 0
      %p42 = por %p40, %p41
      %p43 = scmp.ne.s32.totalorder %s32, %s35
      %p44 = scmp.eq.s32.totalorder %s27, 1
      %p45 = por %p43, %p44
      %p46 = scmp.ne.s32.totalorder %s35, %s36
      %p47 = scmp.eq.s32.totalorder %s27, 0
      %p48 = por %p46, %p47
      %p49 = scmp.ne.s32.totalorder %s35, %s36
      %p50 = scmp.eq.s32.totalorder %s28, 1
      %p51 = por %p49, %p50
      %p53 = scmp.ne.s32.totalorder %s36, %s52
      %p54 = scmp.eq.s32.totalorder %s28, 0
      %p55 = por %p53, %p54
      %s57 = sadd.s32 %s56, 1
      %p60 = scmp.eq.s32.totalorder %s22, 1
      %p61 = scmp.ne.s32.totalorder %s56, %s58
      %p62 = scmp.eq.s32.totalorder %s22, 0
      %p63 = por %p61, %p62
      %p64 = scmp.ne.s32.totalorder %s56, %s58
      %p65 = scmp.eq.s32.totalorder %s27, 1
      %p66 = por %p64, %p65
      %p67 = scmp.ne.s32.totalorder %s58, %s59
      %p68 = scmp.eq.s32.totalorder %s27, 0
      %p69 = por %p67, %p68
      %p70 = scmp.ne.s32.totalorder %s58, %s59
      %p71 = scmp.eq.s32.totalorder %s28, 1
      %p72 = por %p70, %p71
      %p74 = scmp.ne.s32.totalorder %s59, %s73
      %p75 = scmp.eq.s32.totalorder %s28, 0
      %p76 = por %p74, %p75
      %s78 = sadd.s32 %s77, 1
      %p81 = scmp.eq.s32.totalorder %s22, 1
      %p82 = scmp.ne.s32.totalorder %s77, %s79
      %p83 = scmp.eq.s32.totalorder %s22, 0
      %p84 = por %p82, %p83
      %p85 = scmp.ne.s32.totalorder %s77, %s79
      %p86 = scmp.eq.s32.totalorder %s27, 1
      %p87 = por %p85, %p86
      %p88 = scmp.ne.s32.totalorder %s79, %s80
      %p89 = scmp.eq.s32.totalorder %s27, 0
      %p90 = por %p88, %p89
      %p91 = scmp.ne.s32.totalorder %s79, %s80
      %p92 = scmp.eq.s32.totalorder %s28, 1
      %p93 = por %p91, %p92
      %p95 = scmp.ne.s32.totalorder %s80, %s94
      %p96 = scmp.eq.s32.totalorder %s28, 0
      %p97 = por %p95, %p96
      %s99 = sadd.s32 %s98, 1
      %p102 = scmp.eq.s32.totalorder %s22, 1
      %p103 = scmp.ne.s32.totalorder %s98, %s100
      %p104 = scmp.eq.s32.totalorder %s22, 0
      %p105 = por %p103, %p104
      %p106 = scmp.ne.s32.totalorder %s98, %s100
      %p107 = scmp.eq.s32.totalorder %s27, 1
      %p108 = por %p106, %p107
      %p109 = scmp.ne.s32.totalorder %s100, %s101
      %p110 = scmp.eq.s32.totalorder %s27, 0
      %p111 = por %p109, %p110
      %p112 = scmp.ne.s32.totalorder %s100, %s101
      %p113 = scmp.eq.s32.totalorder %s28, 1
      %p114 = por %p112, %p113
      %p116 = scmp.ne.s32.totalorder %s101, %s115
      %p117 = scmp.eq.s32.totalorder %s28, 0
      %p118 = por %p116, %p117
      %s120 = sadd.s32 %s119, 1
      %p123 = scmp.eq.s32.totalorder %s22, 1
      %p124 = scmp.ne.s32.totalorder %s119, %s121
      %p125 = scmp.eq.s32.totalorder %s22, 0
      %p126 = por %p124, %p125
      %p127 = scmp.ne.s32.totalorder %s119, %s121
      %p128 = scmp.eq.s32.totalorder %s27, 1
      %p129 = por %p127, %p128
      %p130 = scmp.ne.s32.totalorder %s121, %s122
      %p131 = scmp.eq.s32.totalorder %s27, 0
      %p132 = por %p130, %p131
      %p133 = scmp.ne.s32.totalorder %s121, %s122
      %p134 = scmp.eq.s32.totalorder %s28, 1
      %p135 = por %p133, %p134
      %p137 = scmp.ne.s32.totalorder %s122, %s136
      %p138 = scmp.eq.s32.totalorder %s28, 0
      %p139 = por %p137, %p138
      %s141 = sadd.s32 %s140, 1
      %p144 = scmp.eq.s32.totalorder %s22, 1
      %p145 = scmp.ne.s32.totalorder %s140, %s142
      %p146 = scmp.eq.s32.totalorder %s22, 0
      %p147 = por %p145, %p146
      %p148 = scmp.ne.s32.totalorder %s140, %s142
      %p149 = scmp.eq.s32.totalorder %s27, 1
      %p150 = por %p148, %p149
      %p151 = scmp.ne.s32.totalorder %s142, %s143
      %p152 = scmp.eq.s32.totalorder %s27, 0
      %p153 = por %p151, %p152
      %p154 = scmp.ne.s32.totalorder %s142, %s143
      %p155 = scmp.eq.s32.totalorder %s28, 1
      %p156 = por %p154, %p155
      %p158 = scmp.ne.s32.totalorder %s143, %s157
      %p159 = scmp.eq.s32.totalorder %s28, 0
      %p160 = por %p158, %p159
      %s162 = sadd.s32 %s161, 1
      %p165 = scmp.eq.s32.totalorder %s22, 1
      %p166 = scmp.ne.s32.totalorder %s161, %s163
      %p167 = scmp.eq.s32.totalorder %s22, 0
      %p168 = por %p166, %p167
      %p169 = scmp.ne.s32.totalorder %s161, %s163
      %p170 = scmp.eq.s32.totalorder %s27, 1
      %p171 = por %p169, %p170
      %p172 = scmp.ne.s32.totalorder %s163, %s164
      %p173 = scmp.eq.s32.totalorder %s27, 0
      %p174 = por %p172, %p173
      %p175 = scmp.ne.s32.totalorder %s163, %s164
      %p176 = scmp.eq.s32.totalorder %s28, 1
      %p177 = por %p175, %p176
      %p179 = scmp.ne.s32.totalorder %s164, %s178
      %p180 = scmp.eq.s32.totalorder %s28, 0
      %p181 = por %p179, %p180
      %s183 = sadd.s32 %s182, 1
      %p186 = scmp.eq.s32.totalorder %s22, 1
      %p187 = scmp.ne.s32.totalorder %s182, %s184
      %p188 = scmp.eq.s32.totalorder %s22, 0
      %p189 = por %p187, %p188
      %p190 = scmp.ne.s32.totalorder %s182, %s184
      %p191 = scmp.eq.s32.totalorder %s27, 1
      %p192 = por %p190, %p191
      %p193 = scmp.ne.s32.totalorder %s184, %s185
      %p194 = scmp.eq.s32.totalorder %s27, 0
      %p195 = por %p193, %p194
      %p196 = scmp.ne.s32.totalorder %s184, %s185
      %p197 = scmp.eq.s32.totalorder %s28, 1
      %p198 = por %p196, %p197
      %p200 = scmp.ne.s32.totalorder %s185, %s199
      %p201 = scmp.eq.s32.totalorder %s28, 0
      %p202 = por %p200, %p201
      %s204 = sadd.s32 %s203, 1
      %p207 = scmp.eq.s32.totalorder %s22, 1
      %p208 = scmp.ne.s32.totalorder %s203, %s205
      %p209 = scmp.eq.s32.totalorder %s22, 0
      %p210 = por %p208, %p209
      %p211 = scmp.ne.s32.totalorder %s203, %s205
      %p212 = scmp.eq.s32.totalorder %s27, 1
      %p213 = por %p211, %p212
      %p214 = scmp.ne.s32.totalorder %s205, %s206
      %p215 = scmp.eq.s32.totalorder %s27, 0
      %p216 = por %p214, %p215
      %p217 = scmp.ne.s32.totalorder %s205, %s206
      %p218 = scmp.eq.s32.totalorder %s28, 1
      %p219 = por %p217, %p218
      %p221 = scmp.ne.s32.totalorder %s206, %s220
      %p222 = scmp.eq.s32.totalorder %s28, 0
      %p223 = por %p221, %p222
      %s225 = sadd.s32 %s224, 1
      %p228 = scmp.eq.s32.totalorder %s22, 1
      %p229 = scmp.ne.s32.totalorder %s224, %s226
      %p230 = scmp.eq.s32.totalorder %s22, 0
      %p231 = por %p229, %p230
      %p232 = scmp.ne.s32.totalorder %s224, %s226
      %p233 = scmp.eq.s32.totalorder %s27, 1
      %p234 = por %p232, %p233
      %p235 = scmp.ne.s32.totalorder %s226, %s227
      %p236 = scmp.eq.s32.totalorder %s27, 0
      %p237 = por %p235, %p236
      %p238 = scmp.ne.s32.totalorder %s226, %s227
      %p239 = scmp.eq.s32.totalorder %s28, 1
      %p240 = por %p238, %p239
      %p242 = scmp.ne.s32.totalorder %s227, %s241
      %p243 = scmp.eq.s32.totalorder %s28, 0
      %p244 = por %p242, %p243
      %s246 = sadd.s32 %s245, 1
      %p249 = scmp.eq.s32.totalorder %s22, 1
      %p250 = scmp.ne.s32.totalorder %s245, %s247
      %p251 = scmp.eq.s32.totalorder %s22, 0
      %p252 = por %p250, %p251
      %p253 = scmp.ne.s32.totalorder %s245, %s247
      %p254 = scmp.eq.s32.totalorder %s27, 1
      %p255 = por %p253, %p254
      %p256 = scmp.ne.s32.totalorder %s247, %s248
      %p257 = scmp.eq.s32.totalorder %s27, 0
      %p258 = por %p256, %p257
      %p259 = scmp.ne.s32.totalorder %s247, %s248
      %p260 = scmp.eq.s32.totalorder %s28, 1
      %p261 = por %p259, %p260
      %p263 = scmp.ne.s32.totalorder %s248, %s262
      %p264 = scmp.eq.s32.totalorder %s28, 0
      %p265 = por %p263, %p264
      %s267 = sadd.s32 %s266, 1
      %p270 = scmp.eq.s32.totalorder %s22, 1
      %p271 = scmp.ne.s32.totalorder %s266, %s268
      %p272 = scmp.eq.s32.totalorder %s22, 0
      %p273 = por %p271, %p272
      %p274 = scmp.ne.s32.totalorder %s266, %s268
      %p275 = scmp.eq.s32.totalorder %s27, 1
      %p276 = por %p274, %p275
      %p277 = scmp.ne.s32.totalorder %s268, %s269
      %p278 = scmp.eq.s32.totalorder %s27, 0
      %p279 = por %p277, %p278
      %p280 = scmp.ne.s32.totalorder %s268, %s269
      %p281 = scmp.eq.s32.totalorder %s28, 1
      %p282 = por %p280, %p281
      %p284 = scmp.ne.s32.totalorder %s269, %s283
      %p285 = scmp.eq.s32.totalorder %s28, 0
      %p286 = por %p284, %p285
      %s288 = sadd.s32 %s287, 1
      %p291 = scmp.eq.s32.totalorder %s22, 1
      %p292 = scmp.ne.s32.totalorder %s287, %s289
      %p293 = scmp.eq.s32.totalorder %s22, 0
      %p294 = por %p292, %p293
      %p295 = scmp.ne.s32.totalorder %s287, %s289
      %p296 = scmp.eq.s32.totalorder %s27, 1
      %p297 = por %p295, %p296
      %p298 = scmp.ne.s32.totalorder %s289, %s290
      %p299 = scmp.eq.s32.totalorder %s27, 0
      %p300 = por %p298, %p299
      %p301 = scmp.ne.s32.totalorder %s289, %s290
      %p302 = scmp.eq.s32.totalorder %s28, 1
      %p303 = por %p301, %p302
      %p305 = scmp.ne.s32.totalorder %s290, %s304
      %p306 = scmp.eq.s32.totalorder %s28, 0
      %p307 = por %p305, %p306
      %s308 = ssub.s32 %s22, %s29
      %p309 = scmp.eq.s32.totalorder %s308, 0
      %s311 = sadd.s32 %s310, 1
      %s312 = scalar_select %p309, %s310, %s311
      %p315 = pneg %p309
      %p316 = scmp.eq.s32.totalorder %s22, 1
      %p317 = por %p315, %p316
      %p318 = scmp.ne.s32.totalorder %s310, %s313
      %p319 = scmp.eq.s32.totalorder %s22, 0
      %p320 = por %p318, %p319
      %p321 = scmp.ne.s32.totalorder %s310, %s313
      %p322 = scmp.eq.s32.totalorder %s27, 1
      %p323 = por %p321, %p322
      %p324 = scmp.ne.s32.totalorder %s313, %s314
      %p325 = scmp.eq.s32.totalorder %s27, 0
      %p326 = por %p324, %p325
      %p327 = scmp.ne.s32.totalorder %s313, %s314
      %p328 = scmp.eq.s32.totalorder %s28, 1
      %p329 = por %p327, %p328
      %p331 = scmp.ne.s32.totalorder %s314, %s330
      %p332 = scmp.eq.s32.totalorder %s28, 0
      %p333 = por %p331, %p332
      %p334 = scmp.le.s32.totalorder 1, %s22
      %p335 = scmp.lt.s32.totalorder %s22, 3
      %p336 = pnand %p334, %p335
      %p337 = pneg %p336
      // Predicated region
      $region9: #{transformer_block.1} parent=5 // pred_check
        _
      $region10: #{transformer_block.1} parent=5 // pred_check_branch
        %339 = sbr.rel (%p336) target = $region12
      $region11: #{transformer_block.1} parent=5 // pred_region
        %s340 = ssub.s32 %s22, 1
        // Predicated region
        $region13: #{transformer_block.1} parent=11 // pred_check
          %p341 = pneg %p69
        $region14: #{transformer_block.1} parent=11 // pred_check_branch
          %343 = sbr.rel (%p341) target = $region16
        $region15: #{transformer_block.1} parent=11 // pred_region
          _
        $region16: #{transformer_block.1} parent=11 // pred_fallthru
          _
        // Predicated region
        $region17: #{transformer_block.1} parent=11 // pred_check
          %p344 = pneg %p90
        $region18: #{transformer_block.1} parent=11 // pred_check_branch
          %346 = sbr.rel (%p344) target = $region20
        $region19: #{transformer_block.1} parent=11 // pred_region
          _
        $region20: #{transformer_block.1} parent=11 // pred_fallthru
          _
        // Predicated region
        $region21: #{transformer_block.1} parent=11 // pred_check
          %p347 = pneg %p111
        $region22: #{transformer_block.1} parent=11 // pred_check_branch
          %349 = sbr.rel (%p347) target = $region24
        $region23: #{transformer_block.1} parent=11 // pred_region
          _
        $region24: #{transformer_block.1} parent=11 // pred_fallthru
          _
        // Predicated region
        $region25: #{transformer_block.1} parent=11 // pred_check
          %p350 = pneg %p132
        $region26: #{transformer_block.1} parent=11 // pred_check_branch
          %352 = sbr.rel (%p350) target = $region28
        $region27: #{transformer_block.1} parent=11 // pred_region
          _
        $region28: #{transformer_block.1} parent=11 // pred_fallthru
          _
        // Predicated region
        $region29: #{transformer_block.1} parent=11 // pred_check
          %p353 = pneg %p153
        $region30: #{transformer_block.1} parent=11 // pred_check_branch
          %355 = sbr.rel (%p353) target = $region32
        $region31: #{transformer_block.1} parent=11 // pred_region
          _
        $region32: #{transformer_block.1} parent=11 // pred_fallthru
          _
        // Predicated region
        $region33: #{transformer_block.1} parent=11 // pred_check
          %p356 = pneg %p174
        $region34: #{transformer_block.1} parent=11 // pred_check_branch
          %358 = sbr.rel (%p356) target = $region36
        $region35: #{transformer_block.1} parent=11 // pred_region
          _
        $region36: #{transformer_block.1} parent=11 // pred_fallthru
          _
        // Predicated region
        $region37: #{transformer_block.1} parent=11 // pred_check
          %p359 = pneg %p195
        $region38: #{transformer_block.1} parent=11 // pred_check_branch
          %361 = sbr.rel (%p359) target = $region40
        $region39: #{transformer_block.1} parent=11 // pred_region
          _
        $region40: #{transformer_block.1} parent=11 // pred_fallthru
          _
        // Predicated region
        $region41: #{transformer_block.1} parent=11 // pred_check
          %p362 = pneg %p216
        $region42: #{transformer_block.1} parent=11 // pred_check_branch
          %364 = sbr.rel (%p362) target = $region44
        $region43: #{transformer_block.1} parent=11 // pred_region
          _
        $region44: #{transformer_block.1} parent=11 // pred_fallthru
          _
        // Predicated region
        $region45: #{transformer_block.1} parent=11 // pred_check
          %p365 = pneg %p237
        $region46: #{transformer_block.1} parent=11 // pred_check_branch
          %367 = sbr.rel (%p365) target = $region48
        $region47: #{transformer_block.1} parent=11 // pred_region
          _
        $region48: #{transformer_block.1} parent=11 // pred_fallthru
          _
        // Predicated region
        $region49: #{transformer_block.1} parent=11 // pred_check
          %p368 = pneg %p258
        $region50: #{transformer_block.1} parent=11 // pred_check_branch
          %370 = sbr.rel (%p368) target = $region52
        $region51: #{transformer_block.1} parent=11 // pred_region
          _
        $region52: #{transformer_block.1} parent=11 // pred_fallthru
          _
        // Predicated region
        $region53: #{transformer_block.1} parent=11 // pred_check
          %p371 = pneg %p279
        $region54: #{transformer_block.1} parent=11 // pred_check_branch
          %373 = sbr.rel (%p371) target = $region56
        $region55: #{transformer_block.1} parent=11 // pred_region
          _
        $region56: #{transformer_block.1} parent=11 // pred_fallthru
          _
        // Predicated region
        $region57: #{transformer_block.1} parent=11 // pred_check
          %p374 = pneg %p300
        $region58: #{transformer_block.1} parent=11 // pred_check_branch
          %376 = sbr.rel (%p374) target = $region60
        $region59: #{transformer_block.1} parent=11 // pred_region
          _
        $region60: #{transformer_block.1} parent=11 // pred_fallthru
          _
      $region12: #{transformer_block.1} parent=5 // pred_fallthru
        _
      %p377 = scmp.lt.s32.totalorder %s22, 2
      // Predicated region
      $region61: #{transformer_block.1} parent=5 // pred_check
        %p378 = pneg %p377
      $region62: #{transformer_block.1} parent=5 // pred_check_branch
        %380 = sbr.rel (%p378) target = $region64
      $region63: #{transformer_block.1} parent=5 // pred_region
        // Predicated region
        $region65: #{transformer_block.1} parent=63 // pred_check
          %p381 = pneg %p42
        $region66: #{transformer_block.1} parent=63 // pred_check_branch
          %383 = sbr.rel (%p381) target = $region68
        $region67: #{transformer_block.1} parent=63 // pred_region
          %s384 = sand.u32 %s32, 1
          %s385 = sand.u32 %s32, 1
          %s386 = smul.addr %s385, 64
          %s387 = scalar_lea.vmem [#allocation2], %s386
          %s388 = smul.addr %s22, 8
          %s389 = scalar_lea.vmem %s0, %s388
          // Predicated region
          $region69: #{transformer_block.1} parent=67 // pred_check
            _
          $region70: #{transformer_block.1} parent=67 // pred_check_branch
            %391 = sbr.rel (0) target = $region72
          $region71: #{transformer_block.1} parent=67 // pred_region
            // Predicated region
            $region73: #{transformer_block.1} parent=71 // pred_check
              _
            $region74: #{transformer_block.1} parent=71 // pred_check_branch
              %393 = sbr.rel (0) target = $region76
            $region75: #{transformer_block.1} parent=71 // pred_region
              // Predicated region
              $region88: #{transformer_block.1} parent=75 // pred_check
                _
              $region89: #{transformer_block.1} parent=75 // pred_check_branch
                %422 = sbr.rel (0) target = $region91
              $region90: #{transformer_block.1} parent=75 // pred_region
                loop: start=0, step=1, limit=1
                $region92: #{transformer_block.1} parent=90 // loop_pre_header
                  _
                $region93: #{transformer_block.1} parent=90 // loop_header
                  %s424 = sphi 0, %s428
                  %p425 = scmp.ge.s32.totalorder %s424, 1
                  %s429 = sphi %s389, %s389
                  %s430 = sphi %s387, %s387
                $region94: #{transformer_block.1} parent=90 // loop_header_branch
                  %427 = sbr.rel (%p425) target = $region98
                $region95: #{transformer_block.1} parent=90 // loop_body
                  %v431 = vld [vmem:[%s429] sm:$0xff]
                  %432 = vst [vmem:[%s430] sm:$0xff] %v431
                  %v433 = vld [vmem:[%s429 + $0x10] sm:$0xff]
                  %434 = vst [vmem:[%s430 + $0x8] sm:$0xff] %v433
                  %v435 = vld [vmem:[%s429 + $0x20] sm:$0xff]
                  %436 = vst [vmem:[%s430 + $0x10] sm:$0xff] %v435
                  %v437 = vld [vmem:[%s429 + $0x30] sm:$0xff]
                  %438 = vst [vmem:[%s430 + $0x18] sm:$0xff] %v437
                  %v439 = vld [vmem:[%s429 + $0x40] sm:$0xff]
                  %440 = vst [vmem:[%s430 + $0x20] sm:$0xff] %v439
                  %v441 = vld [vmem:[%s429 + $0x50] sm:$0xff]
                  %442 = vst [vmem:[%s430 + $0x28] sm:$0xff] %v441
                  %v443 = vld [vmem:[%s429 + $0x60] sm:$0xff]
                  %444 = vst [vmem:[%s430 + $0x30] sm:$0xff] %v443
                  %v445 = vld [vmem:[%s429 + $0x70] sm:$0xff]
                  %446 = vst [vmem:[%s430 + $0x38] sm:$0xff] %v445
                $region96: #{transformer_block.1} parent=90 // loop_footer
                  %s428 = sadd.s32 1, %s424
                $region97: #{transformer_block.1} parent=90 // loop_footer_branch
                  %423 = sbr.rel target = $region93
                $region98: #{transformer_block.1} parent=90 // loop_exit
                  _
              $region91: #{transformer_block.1} parent=75 // pred_fallthru
                _
              // Predicated region
              $region99: #{transformer_block.1} parent=75 // pred_check
                _
              $region100: #{transformer_block.1} parent=75 // pred_check_branch
                %448 = sbr.rel target = $region102
              $region101: #{transformer_block.1} parent=75 // pred_region
                _
              $region102: #{transformer_block.1} parent=75 // pred_fallthru
                _
            $region76: #{transformer_block.1} parent=71 // pred_fallthru
              _
            // Predicated region
            $region77: #{transformer_block.1} parent=71 // pred_check
              _
            $region78: #{transformer_block.1} parent=71 // pred_check_branch
              %395 = sbr.rel target = $region80
            $region79: #{transformer_block.1} parent=71 // pred_region
              loop: start=0, step=1, limit=1
              $region81: #{transformer_block.1} parent=79 // loop_pre_header
                _
              $region82: #{transformer_block.1} parent=79 // loop_header
                %s398 = sphi 0, %s402
                %p399 = scmp.ge.s32.totalorder %s398, 1
                %s403 = sphi %s389, %s389
                %s404 = sphi %s387, %s387
              $region83: #{transformer_block.1} parent=79 // loop_header_branch
                %401 = sbr.rel (%p399) target = $region87
              $region84: #{transformer_block.1} parent=79 // loop_body
                %v405 = vld [vmem:[%s403] sm:$0xff]
                %406 = vst [vmem:[%s404] sm:$0xff] %v405
                %v407 = vld [vmem:[%s403 + $0x10] sm:$0xff]
                %408 = vst [vmem:[%s404 + $0x8] sm:$0xff] %v407
                %v409 = vld [vmem:[%s403 + $0x20] sm:$0xff]
                %410 = vst [vmem:[%s404 + $0x10] sm:$0xff] %v409
                %v411 = vld [vmem:[%s403 + $0x30] sm:$0xff]
                %412 = vst [vmem:[%s404 + $0x18] sm:$0xff] %v411
                %v413 = vld [vmem:[%s403 + $0x40] sm:$0xff]
                %414 = vst [vmem:[%s404 + $0x20] sm:$0xff] %v413
                %v415 = vld [vmem:[%s403 + $0x50] sm:$0xff]
                %416 = vst [vmem:[%s404 + $0x28] sm:$0xff] %v415
                %v417 = vld [vmem:[%s403 + $0x60] sm:$0xff]
                %418 = vst [vmem:[%s404 + $0x30] sm:$0xff] %v417
                %v419 = vld [vmem:[%s403 + $0x70] sm:$0xff]
                %420 = vst [vmem:[%s404 + $0x38] sm:$0xff] %v419
              $region85: #{transformer_block.1} parent=79 // loop_footer
                %s402 = sadd.s32 1, %s398
              $region86: #{transformer_block.1} parent=79 // loop_footer_branch
                %397 = sbr.rel target = $region82
              $region87: #{transformer_block.1} parent=79 // loop_exit
                _
            $region80: #{transformer_block.1} parent=71 // pred_fallthru
              _
          $region72: #{transformer_block.1} parent=67 // pred_fallthru
            _
          %449 = vnop
        $region68: #{transformer_block.1} parent=63 // pred_fallthru
          _
      $region64: #{transformer_block.1} parent=5 // pred_fallthru
        _
      %p450 = scmp.le.s32.totalorder 1, %s22
      %p451 = scmp.lt.s32.totalorder %s22, 3
      %p452 = pnand %p450, %p451
      %p453 = pneg %p452
      // Predicated region
      $region103: #{transformer_block.1} parent=5 // pred_check
        _
      $region104: #{transformer_block.1} parent=5 // pred_check_branch
        %455 = sbr.rel (%p452) target = $region106
      $region105: #{transformer_block.1} parent=5 // pred_region
        %s456 = ssub.s32 %s22, 1
        %s457 = sand.u32 %s35, 1
        %s458 = sand.u32 %s35, 1
        %s459 = smul.addr %s458, 64
        %s460 = scalar_lea.vmem [#allocation2], %s459
        // Predicated region
        $region107: #{transformer_block.1} parent=105 // pred_check
          %p461 = pneg %p48
        $region108: #{transformer_block.1} parent=105 // pred_check_branch
          %463 = sbr.rel (%p461) target = $region110
        $region109: #{transformer_block.1} parent=105 // pred_region
          _
        $region110: #{transformer_block.1} parent=105 // pred_fallthru
          _
        %s464 = sand.u32 %s35, 1
        %s465 = sand.u32 %s35, 1
        %s466 = smul.addr %s465, 64
        %s467 = scalar_lea.vmem [#allocation2], %s466
        %p468 = pneg %p48
        %p469 = pneg %p45
        %p470 = pneg %p69
        %p471 = pneg %p66
        %p472 = pneg %p90
        %p473 = pneg %p87
        %p474 = pneg %p111
        %p475 = pneg %p108
        %p476 = pneg %p132
        %p477 = pneg %p129
        %p478 = pneg %p153
        %p479 = pneg %p150
        %p480 = pneg %p174
        %p481 = pneg %p171
        %p482 = pneg %p195
        %p483 = pneg %p192
        %p484 = pneg %p216
        %p485 = pneg %p213
        %p486 = pneg %p237
        %p487 = pneg %p234
        %p488 = pneg %p258
        %p489 = pneg %p255
        %p490 = pneg %p279
        %p491 = pneg %p276
        %p492 = pneg %p300
        %p493 = pneg %p297
        %p494 = pneg %p326
        %p495 = pneg %p323
        %s496 = sand.u32 %s313, 1
        %s497 = scalar_lea.sflag [#allocation4], %s496
        %s498 = sand.u32 %s313, 1
        %s499 = smul.addr %s498, 64
        %s500 = scalar_lea.vmem [#allocation3], %s499
        %v502 = vld [vmem:[%s460] sm:$0xff]
        %v503 = vld [vmem:[%s460 + $0x8] sm:$0xff]
        %v504 = vld [vmem:[%s460 + $0x10] sm:$0xff]
        %v505 = vld [vmem:[%s460 + $0x18] sm:$0xff]
        %v506 = vld [vmem:[%s460 + $0x20] sm:$0xff]
        %v507 = vld [vmem:[%s460 + $0x28] sm:$0xff]
        %v508 = vld [vmem:[%s460 + $0x30] sm:$0xff]
        %v509 = vld [vmem:[%s460 + $0x38] sm:$0xff]
        %v510 = vld [vmem:[%s1] sm:$0x1]
        %v511 = vld [vmem:[%s2] sm:$0x1]
        %vm512 = vcmask 261120
        %v513 = vsel %vm512, %v502, 0.0
        %514 = vadd.xlane.f32.xlu0 %v513
        %v515 = vpop.xlane.xlu0 %514
        %v516 = vsel %vm512, %v503, 0.0
        %517 = vadd.xlane.f32.xlu0 %v516
        %v518 = vpop.xlane.xlu0 %517
        %v519 = vsel %vm512, %v504, 0.0
        %520 = vadd.xlane.f32.xlu0 %v519
        %v521 = vpop.xlane.xlu0 %520
        %v522 = vsel %vm512, %v505, 0.0
        %523 = vadd.xlane.f32.xlu0 %v522
        %v524 = vpop.xlane.xlu0 %523
        %v525 = vsel %vm512, %v506, 0.0
        %526 = vadd.xlane.f32.xlu0 %v525
        %v527 = vpop.xlane.xlu0 %526
        %v528 = vsel %vm512, %v507, 0.0
        %529 = vadd.xlane.f32.xlu0 %v528
        %v530 = vpop.xlane.xlu0 %529
        %v531 = vsel %vm512, %v508, 0.0
        %532 = vadd.xlane.f32.xlu0 %v531
        %v533 = vpop.xlane.xlu0 %532
        %v534 = vsel %vm512, %v509, 0.0
        %535 = vadd.xlane.f32.xlu0 %v534
        %v536 = vpop.xlane.xlu0 %535
        %v537 = vrcp.pop 32.0
        %v538 = vmul.f32 %v515, %v537
        %v539 = vmul.f32 %v518, %v537
        %v540 = vmul.f32 %v521, %v537
        %v541 = vmul.f32 %v524, %v537
        %v542 = vmul.f32 %v527, %v537
        %v543 = vmul.f32 %v530, %v537
        %v544 = vmul.f32 %v533, %v537
        %v545 = vmul.f32 %v536, %v537
        %v546 = vsub.f32 %v502, %v538
        %v547 = vsub.f32 %v503, %v539
        %v548 = vsub.f32 %v504, %v540
        %v549 = vsub.f32 %v505, %v541
        %v550 = vsub.f32 %v506, %v542
        %v551 = vsub.f32 %v507, %v543
        %v552 = vsub.f32 %v508, %v544
        %v553 = vsub.f32 %v509, %v545
        %v554 = vmul.f32 %v546, %v546
        %v555 = vmul.f32 %v547, %v547
        %v556 = vmul.f32 %v548, %v548
        %v557 = vmul.f32 %v549, %v549
        %v558 = vmul.f32 %v550, %v550
        %v559 = vmul.f32 %v551, %v551
        %v560 = vmul.f32 %v552, %v552
        %v561 = vmul.f32 %v553, %v553
        %v562 = vsel %vm512, %v554, 0.0
        %563 = vadd.xlane.f32.xlu0 %v562
        %v564 = vpop.xlane.xlu0 %563
        %v565 = vsel %vm512, %v555, 0.0
        %566 = vadd.xlane.f32.xlu0 %v565
        %v567 = vpop.xlane.xlu0 %566
        %v568 = vsel %vm512, %v556, 0.0
        %569 = vadd.xlane.f32.xlu0 %v568
        %v570 = vpop.xlane.xlu0 %569
        %v571 = vsel %vm512, %v557, 0.0
        %572 = vadd.xlane.f32.xlu0 %v571
        %v573 = vpop.xlane.xlu0 %572
        %v574 = vsel %vm512, %v558, 0.0
        %575 = vadd.xlane.f32.xlu0 %v574
        %v576 = vpop.xlane.xlu0 %575
        %v577 = vsel %vm512, %v559, 0.0
        %578 = vadd.xlane.f32.xlu0 %v577
        %v579 = vpop.xlane.xlu0 %578
        %v580 = vsel %vm512, %v560, 0.0
        %581 = vadd.xlane.f32.xlu0 %v580
        %v582 = vpop.xlane.xlu0 %581
        %v583 = vsel %vm512, %v561, 0.0
        %584 = vadd.xlane.f32.xlu0 %v583
        %v585 = vpop.xlane.xlu0 %584
        %v586 = vmul.f32 %v564, %v537
        %v587 = vmul.f32 %v567, %v537
        %v588 = vmul.f32 %v570, %v537
        %v589 = vmul.f32 %v573, %v537
        %v590 = vmul.f32 %v576, %v537
        %v591 = vmul.f32 %v579, %v537
        %v592 = vmul.f32 %v582, %v537
        %v593 = vmul.f32 %v585, %v537
        %v594 = vadd.f32 %v586, 1e-05
        %v595 = vadd.f32 %v587, 1e-05
        %v596 = vadd.f32 %v588, 1e-05
        %v597 = vadd.f32 %v589, 1e-05
        %v598 = vadd.f32 %v590, 1e-05
        %v599 = vadd.f32 %v591, 1e-05
        %v600 = vadd.f32 %v592, 1e-05
        %v601 = vadd.f32 %v593, 1e-05
        %v602 = vrsqrt.pop %v594
        %v603 = vrsqrt.pop %v595
        %v604 = vrsqrt.pop %v596
        %v605 = vrsqrt.pop %v597
        %v606 = vrsqrt.pop %v598
        %v607 = vrsqrt.pop %v599
        %v608 = vrsqrt.pop %v600
        %v609 = vrsqrt.pop %v601
        %v610 = vmul.f32 %v546, %v602
        %v611 = vmul.f32 %v547, %v603
        %v612 = vmul.f32 %v548, %v604
        %v613 = vmul.f32 %v549, %v605
        %v614 = vmul.f32 %v550, %v606
        %v615 = vmul.f32 %v551, %v607
        %v616 = vmul.f32 %v552, %v608
        %v617 = vmul.f32 %v553, %v609
        %v619 = vlaneseq
        %v620 = vshrl.u32 %v619, 7
        %v621 = vsub.s32 0, %v620
        %v622 = vrot.slane %v510, %v621
        %v624 = vmul.f32 %v610, %v622
        %v625 = vmul.f32 %v611, %v622
        %v626 = vmul.f32 %v612, %v622
        %v627 = vmul.f32 %v613, %v622
        %v628 = vmul.f32 %v614, %v622
        %v629 = vmul.f32 %v615, %v622
        %v630 = vmul.f32 %v616, %v622
        %v631 = vmul.f32 %v617, %v622
        %v633 = vlaneseq
        %v634 = vshrl.u32 %v633, 7
        %v635 = vsub.s32 0, %v634
        %v636 = vrot.slane %v511, %v635
        %v638 = vadd.f32 %v624, %v636
        %v639 = vadd.f32 %v625, %v636
        %v640 = vadd.f32 %v626, %v636
        %v641 = vadd.f32 %v627, %v636
        %v642 = vadd.f32 %v628, %v636
        %v643 = vadd.f32 %v629, %v636
        %v644 = vadd.f32 %v630, %v636
        %v645 = vadd.f32 %v631, %v636
        %v646 = vpack.c.bf16 %v639, %v638
        %v647 = vpack.c.bf16 %v641, %v640
        %v648 = vpack.c.bf16 %v643, %v642
        %v649 = vpack.c.bf16 %v645, %v644
        %v650 = vld [vmem:[%s3] sm:$0xf]
        %v651 = vld [vmem:[%s3 + $0x4] sm:$0xf]
        %v652 = vld [vmem:[%s3 + $0x8] sm:$0xf]
        %v653 = vld [vmem:[%s3 + $0xc] sm:$0xf]
        %v654 = vld [vmem:[%s4] sm:$0x1]
        %v656 = vlaneseq
        %v657 = vshrl.u32 %v656, 7
        %v658 = vsub.s32 0, %v657
        %v659 = vrot.slane %v654, %v658
        %v665 = vunpack.c.l.b16 %v650
        %v666 = vunpack.c.l.b16 %v651
        %v667 = vunpack.c.l.b16 %v652
        %v668 = vunpack.c.l.b16 %v653
        %v669 = vpack.c.b16 %v666, %v665
        %v670 = vpack.c.b16 %v668, %v667
        %v674 = vsel %vm512, %v646, 0
        %v677 = vsel %vm512, %v647, 0
        %v680 = vsel %vm512, %v648, 0
        %v683 = vsel %vm512, %v649, 0
        %685 = vmatprep.subr.bf16.mxu0 0
        %686 = vmatpush1.bf16.msra.mxu0 %v669
        %687 = vmatprep.subr.bf16.mxu0 0
        %688 = vmatpush1.bf16.msra.mxu0 %v670
        %689 = vmatprep.subr.bf16.mxu0 0
        %690 = vmatpush1.bf16.msra.mxu0 0
        %691 = vmatprep.subr.bf16.mxu0 0
        %692 = vmatpush1.bf16.msra.mxu0 0
        %693 = vmatprep.subr.bf16.mxu0 0
        %694 = vmatpush1.bf16.msra.mxu0 0
        %695 = vmatprep.subr.bf16.mxu0 0
        %696 = vmatpush1.bf16.msra.mxu0 0
        %697 = vmatprep.subr.bf16.mxu0 0
        %698 = vmatpush1.bf16.msra.mxu0 0
        %699 = vmatprep.subr.bf16.mxu0 0
        %700 = vmatpush1.bf16.msra.mxu0 0
        %701 = vmatprep.subr.bf16.mxu0 0
        %702 = vmatpush1.bf16.msra.mxu0 0
        %703 = vmatprep.subr.bf16.mxu0 0
        %704 = vmatpush1.bf16.msra.mxu0 0
        %705 = vmatprep.subr.bf16.mxu0 0
        %706 = vmatpush1.bf16.msra.mxu0 0
        %707 = vmatprep.subr.bf16.mxu0 0
        %708 = vmatpush1.bf16.msra.mxu0 0
        %709 = vmatprep.subr.bf16.mxu0 0
        %710 = vmatpush1.bf16.msra.mxu0 0
        %711 = vmatprep.subr.bf16.mxu0 0
        %712 = vmatpush1.bf16.msra.mxu0 0
        %713 = vmatprep.subr.bf16.mxu0 0
        %714 = vmatpush1.bf16.msra.mxu0 0
        %715 = vmatprep.subr.bf16.mxu0 0
        %716 = vmatpush1.bf16.msra.mxu0 0
        %717 = vmatprep.mubr.bf16.mxu0 0
        %718 = vmatmul.mubr.bf16.gmra.mrb[0].mxu0 %v674
        %v719 = vpop.f32.mrb[0].mxu0
        %v720 = vadd.f32 %v659, %v719
        %v721 = vpop.f32.mrb[0].mxu0
        %v722 = vpop.f32.mrb[0].mxu0
        %v723 = vadd.f32 %v659, %v722
        %v724 = vpop.f32.mrb[0].mxu0
        %725 = vmatprep.mubr.bf16.mxu0 0
        %726 = vmatmul.mubr.bf16.gmra.mrb[0].mxu0 %v677
        %v727 = vpop.f32.mrb[0].mxu0
        %v728 = vadd.f32 %v659, %v727
        %v729 = vpop.f32.mrb[0].mxu0
        %v730 = vpop.f32.mrb[0].mxu0
        %v731 = vadd.f32 %v659, %v730
        %v732 = vpop.f32.mrb[0].mxu0
        %733 = vmatprep.mubr.bf16.mxu0 0
        %734 = vmatmul.mubr.bf16.gmra.mrb[0].mxu0 %v680
        %v735 = vpop.f32.mrb[0].mxu0
        %v736 = vadd.f32 %v659, %v735
        %v737 = vpop.f32.mrb[0].mxu0
        %v738 = vpop.f32.mrb[0].mxu0
        %v739 = vadd.f32 %v659, %v738
        %v740 = vpop.f32.mrb[0].mxu0
        %741 = vmatprep.mubr.bf16.mxu0 0
        %742 = vmatmul.mubr.bf16.gmra.mrb[0].mxu0 %v683
        %v743 = vpop.f32.mrb[0].mxu0
        %v744 = vadd.f32 %v659, %v743
        %v745 = vpop.f32.mrb[0].mxu0
        %v746 = vpop.f32.mrb[0].mxu0
        %v747 = vadd.f32 %v659, %v746
        %v748 = vpop.f32.mrb[0].mxu0
        %749 = vdwg.mxu0
        %v750 = vmul.f32 %v720, 0.35355338
        %v751 = vmul.f32 %v723, 0.35355338
        %v752 = vmul.f32 %v728, 0.35355338
        %v753 = vmul.f32 %v731, 0.35355338
        %v754 = vmul.f32 %v736, 0.35355338
        %v755 = vmul.f32 %v739, 0.35355338
        %v756 = vmul.f32 %v744, 0.35355338
        %v757 = vmul.f32 %v747, 0.35355338
        %v758 = vpack.c.bf16 %v751, %v750
        %v759 = vpack.c.bf16 %v753, %v752
        %v760 = vpack.c.bf16 %v755, %v754
        %v761 = vpack.c.bf16 %v757, %v756
        %v762 = vpack.c.bf16 %v723, %v720
        %v763 = vpack.c.bf16 %v731, %v728
        %v764 = vpack.c.bf16 %v739, %v736
        %v765 = vpack.c.bf16 %v747, %v744
        %v766 = vlaneseq
        %v767 = vshrl.u32 %v766, 7
        %v768 = vadd.s32 %v767, 8
        %v769 = vadd.s32 %v767, 16
        %v770 = vadd.s32 %v767, 24
        %v771 = vadd.s32 %v767, 32
        %v772 = vadd.s32 %v767, 40
        %v773 = vadd.s32 %v767, 48
        %v774 = vadd.s32 %v767, 56
        %v775 = vlaneseq
        %v776 = vand.u32 %v775, 127
        %vm777 = vcmp.lt.s32.totalorder %v767, 0
        %v778 = vsub.s32 0, %v767
        %v779 = vsel %vm777, %v778, %v767
        %v780 = vshrl.u32 %v779, 3
        %v781 = vand.u32 %v779, 7
        %v782 = vsub.s32 0, %v781
        %v783 = vsel %vm777, %v782, %v781
        %vm784 = vcmp.lt.s32.totalorder %v768, 0
        %v785 = vsub.s32 0, %v768
        %v786 = vsel %vm784, %v785, %v768
        %v787 = vshrl.u32 %v786, 3
        %v788 = vand.u32 %v786, 7
        %v789 = vsub.s32 0, %v788
        %v790 = vsel %vm784, %v789, %v788
        %vm791 = vcmp.lt.s32.totalorder %v769, 0
        %v792 = vsub.s32 0, %v769
        %v793 = vsel %vm791, %v792, %v769
        %v794 = vshrl.u32 %v793, 3
        %v795 = vand.u32 %v793, 7
        %v796 = vsub.s32 0, %v795
        %v797 = vsel %vm791, %v796, %v795
        %vm798 = vcmp.lt.s32.totalorder %v770, 0
        %v799 = vsub.s32 0, %v770
        %v800 = vsel %vm798, %v799, %v770
        %v801 = vshrl.u32 %v800, 3
        %v802 = vand.u32 %v800, 7
        %v803 = vsub.s32 0, %v802
        %v804 = vsel %vm798, %v803, %v802
        %vm805 = vcmp.lt.s32.totalorder %v771, 0
        %v806 = vsub.s32 0, %v771
        %v807 = vsel %vm805, %v806, %v771
        %v808 = vshrl.u32 %v807, 3
        %v809 = vand.u32 %v807, 7
        %v810 = vsub.s32 0, %v809
        %v811 = vsel %vm805, %v810, %v809
        %vm812 = vcmp.lt.s32.totalorder %v772, 0
        %v813 = vsub.s32 0, %v772
        %v814 = vsel %vm812, %v813, %v772
        %v815 = vshrl.u32 %v814, 3
        %v816 = vand.u32 %v814, 7
        %v817 = vsub.s32 0, %v816
        %v818 = vsel %vm812, %v817, %v816
        %vm819 = vcmp.lt.s32.totalorder %v773, 0
        %v820 = vsub.s32 0, %v773
        %v821 = vsel %vm819, %v820, %v773
        %v822 = vshrl.u32 %v821, 3
        %v823 = vand.u32 %v821, 7
        %v824 = vsub.s32 0, %v823
        %v825 = vsel %vm819, %v824, %v823
        %vm826 = vcmp.lt.s32.totalorder %v774, 0
        %v827 = vsub.s32 0, %v774
        %v828 = vsel %vm826, %v827, %v774
        %v829 = vshrl.u32 %v828, 3
        %v830 = vand.u32 %v828, 7
        %v831 = vsub.s32 0, %v830
        %v832 = vsel %vm826, %v831, %v830
        %vm833 = vcmp.ne.s32.totalorder %v783, 0
        %vm834 = vcmp.ne.s32.totalorder %v790, 0
        %vm835 = vcmp.ne.s32.totalorder %v797, 0
        %vm836 = vcmp.ne.s32.totalorder %v804, 0
        %vm837 = vcmp.ne.s32.totalorder %v811, 0
        %vm838 = vcmp.ne.s32.totalorder %v818, 0
        %vm839 = vcmp.ne.s32.totalorder %v825, 0
        %vm840 = vcmp.ne.s32.totalorder %v832, 0
        %vm841 = vcmp.lt.s32.totalorder %v783, 0
        %vm842 = vcmp.lt.s32.totalorder %v790, 0
        %vm843 = vcmp.lt.s32.totalorder %v797, 0
        %vm844 = vcmp.lt.s32.totalorder %v804, 0
        %vm845 = vcmp.lt.s32.totalorder %v811, 0
        %vm846 = vcmp.lt.s32.totalorder %v818, 0
        %vm847 = vcmp.lt.s32.totalorder %v825, 0
        %vm848 = vcmp.lt.s32.totalorder %v832, 0
        %vm849 = vmand %vm841, %vm833
        %vm850 = vmand %vm842, %vm834
        %vm851 = vmand %vm843, %vm835
        %vm852 = vmand %vm844, %vm836
        %vm853 = vmand %vm845, %vm837
        %vm854 = vmand %vm846, %vm838
        %vm855 = vmand %vm847, %vm839
        %vm856 = vmand %vm848, %vm840
        %v857 = vadd.s32 %v783, 8
        %v858 = vadd.s32 %v790, 8
        %v859 = vadd.s32 %v797, 8
        %v860 = vadd.s32 %v804, 8
        %v861 = vadd.s32 %v811, 8
        %v862 = vadd.s32 %v818, 8
        %v863 = vadd.s32 %v825, 8
        %v864 = vadd.s32 %v832, 8
        %v865 = vsel %vm849, %v857, %v783
        %v866 = vsel %vm850, %v858, %v790
        %v867 = vsel %vm851, %v859, %v797
        %v868 = vsel %vm852, %v860, %v804
        %v869 = vsel %vm853, %v861, %v811
        %v870 = vsel %vm854, %v862, %v818
        %v871 = vsel %vm855, %v863, %v825
        %v872 = vsel %vm856, %v864, %v832
        %vm873 = vcmp.lt.s32.totalorder %v776, 0
        %v874 = vsub.s32 0, %v776
        %v875 = vsel %vm873, %v874, %v776
        %v876 = vshrl.u32 %v875, 3
        %v877 = vand.u32 %v875, 7
        %v878 = vsub.s32 0, %v877
        %v879 = vsel %vm873, %v878, %v877
        %vm880 = vcmp.ne.s32.totalorder %v879, 0
        %vm881 = vcmp.lt.s32.totalorder %v879, 0
        %vm882 = vmand %vm881, %vm880
        %v883 = vadd.s32 %v879, 8
        %v884 = vsel %vm882, %v883, %v879
        %vm885 = vcmp.eq.s32.totalorder %v865, %v884
        %vm886 = vcmp.eq.s32.totalorder %v866, %v884
        %vm887 = vcmp.eq.s32.totalorder %v867, %v884
        %vm888 = vcmp.eq.s32.totalorder %v868, %v884
        %vm889 = vcmp.eq.s32.totalorder %v869, %v884
        %vm890 = vcmp.eq.s32.totalorder %v870, %v884
        %vm891 = vcmp.eq.s32.totalorder %v871, %v884
        %vm892 = vcmp.eq.s32.totalorder %v872, %v884
        %v893 = vsel %vm885, 0.0, -1e+30
        %v894 = vsel %vm886, 0.0, -1e+30
        %v895 = vsel %vm887, 0.0, -1e+30
        %v896 = vsel %vm888, 0.0, -1e+30
        %v897 = vsel %vm889, 0.0, -1e+30
        %v898 = vsel %vm890, 0.0, -1e+30
        %v899 = vsel %vm891, 0.0, -1e+30
        %v900 = vsel %vm892, 0.0, -1e+30
        %905 = vrot.lane.b32.xlu0 %v762, 96
        %v906 = vpop.permute.xlu0 %905
        %907 = vrot.lane.b32.xlu0 %v763, 96
        %v908 = vpop.permute.xlu0 %907
        %909 = vrot.lane.b32.xlu0 %v764, 96
        %v910 = vpop.permute.xlu0 %909
        %911 = vrot.lane.b32.xlu0 %v765, 96
        %v912 = vpop.permute.xlu0 %911
        %vm913 = vcmask 64512
        %v915 = vsel %vm913, %v758, 0
        %v918 = vsel %vm913, %v759, 0
        %v921 = vsel %vm913, %v760, 0
        %v924 = vsel %vm913, %v761, 0
        %v927 = vsel %vm913, %v906, 0
        %v930 = vsel %vm913, %v908, 0
        %v933 = vsel %vm913, %v910, 0
        %v936 = vsel %vm913, %v912, 0
        %938 = vmatprep.subr.bf16.mxu0 0
        %939 = vmatpush1.bf16.xpose.msra.mxu0 %v927
        %940 = vmatprep.subr.bf16.mxu0 0
        %941 = vmatpush1.bf16.xpose.msra.mxu0 %v930
        %942 = vmatprep.subr.bf16.mxu0 0
        %943 = vmatpush1.bf16.xpose.msra.mxu0 %v933
        %944 = vmatprep.subr.bf16.mxu0 0
        %945 = vmatpush1.bf16.xpose.msra.mxu0 %v936
        %946 = vmatprep.subr.bf16.mxu0 0
        %947 = vmatpush1.bf16.xpose.msra.mxu0 0
        %948 = vmatprep.subr.bf16.mxu0 0
        %949 = vmatpush1.bf16.xpose.msra.mxu0 0
        %950 = vmatprep.subr.bf16.mxu0 0
        %951 = vmatpush1.bf16.xpose.msra.mxu0 0
        %952 = vmatprep.subr.bf16.mxu0 0
        %953 = vmatpush1.bf16.xpose.msra.mxu0 0
        %954 = vmatprep.subr.bf16.mxu0 0
        %955 = vmatpush1.bf16.xpose.msra.mxu0 0
        %956 = vmatprep.subr.bf16.mxu0 0
        %957 = vmatpush1.bf16.xpose.msra.mxu0 0
        %958 = vmatprep.subr.bf16.mxu0 0
        %959 = vmatpush1.bf16.xpose.msra.mxu0 0
        %960 = vmatprep.subr.bf16.mxu0 0
        %961 = vmatpush1.bf16.xpose.msra.mxu0 0
        %962 = vmatprep.subr.bf16.mxu0 0
        %963 = vmatpush1.bf16.xpose.msra.mxu0 0
        %964 = vmatprep.subr.bf16.mxu0 0
        %965 = vmatpush1.bf16.xpose.msra.mxu0 0
        %966 = vmatprep.subr.bf16.mxu0 0
        %967 = vmatpush1.bf16.xpose.msra.mxu0 0
        %968 = vmatprep.subr.bf16.mxu0 0
        %969 = vmatpush1.bf16.xpose.msra.mxu0 0
        %970 = vmatprep.mubr.bf16.mxu0 0
        %971 = vmatmul.mubr.bf16.gmra.mrb[0].mxu0 %v915
        %v972 = vpop.f32.mrb[0].mxu0
        %v973 = vadd.f32 %v893, %v972
        %v974 = vpop.f32.mrb[0].mxu0
        %v975 = vpop.f32.mrb[0].mxu0
        %v976 = vadd.f32 %v894, %v975
        %v977 = vpop.f32.mrb[0].mxu0
        %978 = vmatprep.mubr.bf16.mxu0 0
        %979 = vmatmul.mubr.bf16.gmra.mrb[0].mxu0 %v918
        %v980 = vpop.f32.mrb[0].mxu0
        %v981 = vadd.f32 %v895, %v980
        %v982 = vpop.f32.mrb[0].mxu0
        %v983 = vpop.f32.mrb[0].mxu0
        %v984 = vadd.f32 %v896, %v983
        %v985 = vpop.f32.mrb[0].mxu0
        %986 = vmatprep.mubr.bf16.mxu0 0
        %987 = vmatmul.mubr.bf16.gmra.mrb[0].mxu0 %v921
        %v988 = vpop.f32.mrb[0].mxu0
        %v989 = vadd.f32 %v897, %v988
        %v990 = vpop.f32.mrb[0].mxu0
        %v991 = vpop.f32.mrb[0].mxu0
        %v992 = vadd.f32 %v898, %v991
        %v993 = vpop.f32.mrb[0].mxu0
        %994 = vmatprep.mubr.bf16.mxu0 0
        %995 = vmatmul.mubr.bf16.gmra.mrb[0].mxu0 %v924
        %v996 = vpop.f32.mrb[0].mxu0
        %v997 = vadd.f32 %v899, %v996
        %v998 = vpop.f32.mrb[0].mxu0
        %v999 = vpop.f32.mrb[0].mxu0
        %v1000 = vadd.f32 %v900, %v999
        %v1001 = vpop.f32.mrb[0].mxu0
        %1002 = vdwg.mxu0
        %vm1003 = vcmask 523264
        %v1004 = vsel %vm1003, %v973, -inf
        %1005 = vmax.xlane.f32.xlu0 %v1004
        %v1006 = vpop.xlane.xlu0 %1005
        %v1007 = vsel %vm1003, %v976, -inf
        %1008 = vmax.xlane.f32.xlu0 %v1007
        %v1009 = vpop.xlane.xlu0 %1008
        %v1010 = vsel %vm1003, %v981, -inf
        %1011 = vmax.xlane.f32.xlu0 %v1010
        %v1012 = vpop.xlane.xlu0 %1011
        %v1013 = vsel %vm1003, %v984, -inf
        %1014 = vmax.xlane.f32.xlu0 %v1013
        %v1015 = vpop.xlane.xlu0 %1014
        %v1016 = vsel %vm1003, %v989, -inf
        %1017 = vmax.xlane.f32.xlu0 %v1016
        %v1018 = vpop.xlane.xlu0 %1017
        %v1019 = vsel %vm1003, %v992, -inf
        %1020 = vmax.xlane.f32.xlu0 %v1019
        %v1021 = vpop.xlane.xlu0 %1020
        %v1022 = vsel %vm1003, %v997, -inf
        %1023 = vmax.xlane.f32.xlu0 %v1022
        %v1024 = vpop.xlane.xlu0 %1023
        %v1025 = vsel %vm1003, %v1000, -inf
        %1026 = vmax.xlane.f32.xlu0 %v1025
        %v1027 = vpop.xlane.xlu0 %1026
        %v1028 = vsub.f32 %v973, %v1006
        %v1029 = vsub.f32 %v976, %v1009
        %v1030 = vsub.f32 %v981, %v1012
        %v1031 = vsub.f32 %v984, %v1015
        %v1032 = vsub.f32 %v989, %v1018
        %v1033 = vsub.f32 %v992, %v1021
        %v1034 = vsub.f32 %v997, %v1024
        %v1035 = vsub.f32 %v1000, %v1027
        %v1036 = vmul.f32 %v1028, 1.442695
        %v1037 = vpow.pop %v1036
        %v1038 = vmul.f32 %v1029, 1.442695
        %v1039 = vpow.pop %v1038
        %v1040 = vmul.f32 %v1030, 1.442695
        %v1041 = vpow.pop %v1040
        %v1042 = vmul.f32 %v1031, 1.442695
        %v1043 = vpow.pop %v1042
        %v1044 = vmul.f32 %v1032, 1.442695
        %v1045 = vpow.pop %v1044
        %v1046 = vmul.f32 %v1033, 1.442695
        %v1047 = vpow.pop %v1046
        %v1048 = vmul.f32 %v1034, 1.442695
        %v1049 = vpow.pop %v1048
        %v1050 = vmul.f32 %v1035, 1.442695
        %v1051 = vpow.pop %v1050
        %v1052 = vsel %vm1003, %v1037, 0.0
        %1053 = vadd.xlane.f32.xlu0 %v1052
        %v1054 = vpop.xlane.xlu0 %1053
        %v1055 = vsel %vm1003, %v1039, 0.0
        %1056 = vadd.xlane.f32.xlu0 %v1055
        %v1057 = vpop.xlane.xlu0 %1056
        %v1058 = vsel %vm1003, %v1041, 0.0
        %1059 = vadd.xlane.f32.xlu0 %v1058
        %v1060 = vpop.xlane.xlu0 %1059
        %v1061 = vsel %vm1003, %v1043, 0.0
        %1062 = vadd.xlane.f32.xlu0 %v1061
        %v1063 = vpop.xlane.xlu0 %1062
        %v1064 = vsel %vm1003, %v1045, 0.0
        %1065 = vadd.xlane.f32.xlu0 %v1064
        %v1066 = vpop.xlane.xlu0 %1065
        %v1067 = vsel %vm1003, %v1047, 0.0
        %1068 = vadd.xlane.f32.xlu0 %v1067
        %v1069 = vpop.xlane.xlu0 %1068
        %v1070 = vsel %vm1003, %v1049, 0.0
        %1071 = vadd.xlane.f32.xlu0 %v1070
        %v1072 = vpop.xlane.xlu0 %1071
        %v1073 = vsel %vm1003, %v1051, 0.0
        %1074 = vadd.xlane.f32.xlu0 %v1073
        %v1075 = vpop.xlane.xlu0 %1074
        %v1076 = vrcp.pop %v1054
        %v1077 = vrcp.pop %v1057
        %v1078 = vrcp.pop %v1060
        %v1079 = vrcp.pop %v1063
        %v1080 = vrcp.pop %v1066
        %v1081 = vrcp.pop %v1069
        %v1082 = vrcp.pop %v1072
        %v1083 = vrcp.pop %v1075
        %v1084 = vmul.f32 %v1037, %v1076
        %v1085 = vmul.f32 %v1039, %v1077
        %v1086 = vmul.f32 %v1041, %v1078
        %v1087 = vmul.f32 %v1043, %v1079
        %v1088 = vmul.f32 %v1045, %v1080
        %v1089 = vmul.f32 %v1047, %v1081
        %v1090 = vmul.f32 %v1049, %v1082
        %v1091 = vmul.f32 %v1051, %v1083
        %v1092 = vpack.c.bf16 %v1085, %v1084
        %v1093 = vpack.c.bf16 %v1087, %v1086
        %v1094 = vpack.c.bf16 %v1089, %v1088
        %v1095 = vpack.c.bf16 %v1091, %v1090
        %1096 = vrot.lane.b32.xlu0 %v762, 64
        %v1097 = vpop.permute.xlu0 %1096
        %1098 = vrot.lane.b32.xlu0 %v763, 64
        %v1099 = vpop.permute.xlu0 %1098
        %1100 = vrot.lane.b32.xlu0 %v764, 64
        %v1101 = vpop.permute.xlu0 %1100
        %1102 = vrot.lane.b32.xlu0 %v765, 64
        %v1103 = vpop.permute.xlu0 %1102
        %v1109 = vsel %vm1003, %v1092, 0
        %v1112 = vsel %vm1003, %v1093, 0
        %v1115 = vsel %vm1003, %v1094, 0
        %v1118 = vsel %vm1003, %v1095, 0
        %1120 = vmatprep.subr.bf16.mxu0 0
        %1121 = vmatpush1.bf16.msra.mxu0 %v1097
        %1122 = vmatprep.subr.bf16.mxu0 0
        %1123 = vmatpush1.bf16.msra.mxu0 %v1099
        %1124 = vmatprep.subr.bf16.mxu0 0
        %1125 = vmatpush1.bf16.msra.mxu0 %v1101
        %1126 = vmatprep.subr.bf16.mxu0 0
        %1127 = vmatpush1.bf16.msra.mxu0 %v1103
        %1128 = vmatprep.subr.bf16.mxu0 0
        %1129 = vmatpush1.bf16.msra.mxu0 0
        %1130 = vmatprep.subr.bf16.mxu0 0
        %1131 = vmatpush1.bf16.msra.mxu0 0
        %1132 = vmatprep.subr.bf16.mxu0 0
        %1133 = vmatpush1.bf16.msra.mxu0 0
        %1134 = vmatprep.subr.bf16.mxu0 0
        %1135 = vmatpush1.bf16.msra.mxu0 0
        %1136 = vmatprep.subr.bf16.mxu0 0
        %1137 = vmatpush1.bf16.msra.mxu0 0
        %1138 = vmatprep.subr.bf16.mxu0 0
        %1139 = vmatpush1.bf16.msra.mxu0 0
        %1140 = vmatprep.subr.bf16.mxu0 0
        %1141 = vmatpush1.bf16.msra.mxu0 0
        %1142 = vmatprep.subr.bf16.mxu0 0
        %1143 = vmatpush1.bf16.msra.mxu0 0
        %1144 = vmatprep.subr.bf16.mxu0 0
        %1145 = vmatpush1.bf16.msra.mxu0 0
        %1146 = vmatprep.subr.bf16.mxu0 0
        %1147 = vmatpush1.bf16.msra.mxu0 0
        %1148 = vmatprep.subr.bf16.mxu0 0
        %1149 = vmatpush1.bf16.msra.mxu0 0
        %1150 = vmatprep.subr.bf16.mxu0 0
        %1151 = vmatpush1.bf16.msra.mxu0 0
        %1152 = vmatprep.mubr.bf16.mxu0 0
        %1153 = vmatmul.mubr.bf16.gmra.mrb[0].mxu0 %v1109
        %v1154 = vpop.f32.mrb[0].mxu0
        %v1155 = vadd.f32 0.0, %v1154
        %v1156 = vpop.f32.mrb[0].mxu0
        %v1157 = vpop.f32.mrb[0].mxu0
        %v1158 = vadd.f32 0.0, %v1157
        %v1159 = vpop.f32.mrb[0].mxu0
        %1160 = vmatprep.mubr.bf16.mxu0 0
        %1161 = vmatmul.mubr.bf16.gmra.mrb[0].mxu0 %v1112
        %v1162 = vpop.f32.mrb[0].mxu0
        %v1163 = vadd.f32 0.0, %v1162
        %v1164 = vpop.f32.mrb[0].mxu0
        %v1165 = vpop.f32.mrb[0].mxu0
        %v1166 = vadd.f32 0.0, %v1165
        %v1167 = vpop.f32.mrb[0].mxu0
        %1168 = vmatprep.mubr.bf16.mxu0 0
        %1169 = vmatmul.mubr.bf16.gmra.mrb[0].mxu0 %v1115
        %v1170 = vpop.f32.mrb[0].mxu0
        %v1171 = vadd.f32 0.0, %v1170
        %v1172 = vpop.f32.mrb[0].mxu0
        %v1173 = vpop.f32.mrb[0].mxu0
        %v1174 = vadd.f32 0.0, %v1173
        %v1175 = vpop.f32.mrb[0].mxu0
        %1176 = vmatprep.mubr.bf16.mxu0 0
        %1177 = vmatmul.mubr.bf16.gmra.mrb[0].mxu0 %v1118
        %v1178 = vpop.f32.mrb[0].mxu0
        %v1179 = vadd.f32 0.0, %v1178
        %v1180 = vpop.f32.mrb[0].mxu0
        %v1181 = vpop.f32.mrb[0].mxu0
        %v1182 = vadd.f32 0.0, %v1181
        %v1183 = vpop.f32.mrb[0].mxu0
        %1184 = vdwg.mxu0
        %1189 = vrot.lane.b32.xlu0 %v758, 120
        %v1190 = vpop.permute.xlu0 %1189
        %1191 = vrot.lane.b32.xlu0 %v759, 120
        %v1192 = vpop.permute.xlu0 %1191
        %1193 = vrot.lane.b32.xlu0 %v760, 120
        %v1194 = vpop.permute.xlu0 %1193
        %1195 = vrot.lane.b32.xlu0 %v761, 120
        %v1196 = vpop.permute.xlu0 %1195
        %1197 = vrot.lane.b32.xlu0 %v762, 88
        %v1198 = vpop.permute.xlu0 %1197
        %1199 = vrot.lane.b32.xlu0 %v763, 88
        %v1200 = vpop.permute.xlu0 %1199
        %1201 = vrot.lane.b32.xlu0 %v764, 88
        %v1202 = vpop.permute.xlu0 %1201
        %1203 = vrot.lane.b32.xlu0 %v765, 88
        %v1204 = vpop.permute.xlu0 %1203
        %v1206 = vsel %vm913, %v1190, 0
        %v1209 = vsel %vm913, %v1192, 0
        %v1212 = vsel %vm913, %v1194, 0
        %v1215 = vsel %vm913, %v1196, 0
        %v1218 = vsel %vm913, %v1198, 0
        %v1221 = vsel %vm913, %v1200, 0
        %v1224 = vsel %vm913, %v1202, 0
        %v1227 = vsel %vm913, %v1204, 0
        %1229 = vmatprep.subr.bf16.mxu0 0
        %1230 = vmatpush1.bf16.xpose.msra.mxu0 %v1218
        %1231 = vmatprep.subr.bf16.mxu0 0
        %1232 = vmatpush1.bf16.xpose.msra.mxu0 %v1221
        %1233 = vmatprep.subr.bf16.mxu0 0
        %1234 = vmatpush1.bf16.xpose.msra.mxu0 %v1224
        %1235 = vmatprep.subr.bf16.mxu0 0
        %1236 = vmatpush1.bf16.xpose.msra.mxu0 %v1227
        %1237 = vmatprep.subr.bf16.mxu0 0
        %1238 = vmatpush1.bf16.xpose.msra.mxu0 0
        %1239 = vmatprep.subr.bf16.mxu0 0
        %1240 = vmatpush1.bf16.xpose.msra.mxu0 0
        %1241 = vmatprep.subr.bf16.mxu0 0
        %1242 = vmatpush1.bf16.xpose.msra.mxu0 0
        %1243 = vmatprep.subr.bf16.mxu0 0
        %1244 = vmatpush1.bf16.xpose.msra.mxu0 0
        %1245 = vmatprep.subr.bf16.mxu0 0
        %1246 = vmatpush1.bf16.xpose.msra.mxu0 0
        %1247 = vmatprep.subr.bf16.mxu0 0
        %1248 = vmatpush1.bf16.xpose.msra.mxu0 0
        %1249 = vmatprep.subr.bf16.mxu0 0
        %1250 = vmatpush1.bf16.xpose.msra.mxu0 0
        %1251 = vmatprep.subr.bf16.mxu0 0
        %1252 = vmatpush1.bf16.xpose.msra.mxu0 0
        %1253 = vmatprep.subr.bf16.mxu0 0
        %1254 = vmatpush1.bf16.xpose.msra.mxu0 0
        %1255 = vmatprep.subr.bf16.mxu0 0
        %1256 = vmatpush1.bf16.xpose.msra.mxu0 0
        %1257 = vmatprep.subr.bf16.mxu0 0
        %1258 = vmatpush1.bf16.xpose.msra.mxu0 0
        %1259 = vmatprep.subr.bf16.mxu0 0
        %1260 = vmatpush1.bf16.xpose.msra.mxu0 0
        %1261 = vmatprep.mubr.bf16.mxu0 0
        %1262 = vmatmul.mubr.bf16.gmra.mrb[0].mxu0 %v1206
        %v1263 = vpop.f32.mrb[0].mxu0
        %v1264 = vadd.f32 %v893, %v1263
        %v1265 = vpop.f32.mrb[0].mxu0
        %v1266 = vpop.f32.mrb[0].mxu0
        %v1267 = vadd.f32 %v894, %v1266
        %v1268 = vpop.f32.mrb[0].mxu0
        %1269 = vmatprep.mubr.bf16.mxu0 0
        %1270 = vmatmul.mubr.bf16.gmra.mrb[0].mxu0 %v1209
        %v1271 = vpop.f32.mrb[0].mxu0
        %v1272 = vadd.f32 %v895, %v1271
        %v1273 = vpop.f32.mrb[0].mxu0
        %v1274 = vpop.f32.mrb[0].mxu0
        %v1275 = vadd.f32 %v896, %v1274
        %v1276 = vpop.f32.mrb[0].mxu0
        %1277 = vmatprep.mubr.bf16.mxu0 0
        %1278 = vmatmul.mubr.bf16.gmra.mrb[0].mxu0 %v1212
        %v1279 = vpop.f32.mrb[0].mxu0
        %v1280 = vadd.f32 %v897, %v1279
        %v1281 = vpop.f32.mrb[0].mxu0
        %v1282 = vpop.f32.mrb[0].mxu0
        %v1283 = vadd.f32 %v898, %v1282
        %v1284 = vpop.f32.mrb[0].mxu0
        %1285 = vmatprep.mubr.bf16.mxu0 0
        %1286 = vmatmul.mubr.bf16.gmra.mrb[0].mxu0 %v1215
        %v1287 = vpop.f32.mrb[0].mxu0
        %v1288 = vadd.f32 %v899, %v1287
        %v1289 = vpop.f32.mrb[0].mxu0
        %v1290 = vpop.f32.mrb[0].mxu0
        %v1291 = vadd.f32 %v900, %v1290
        %v1292 = vpop.f32.mrb[0].mxu0
        %1293 = vdwg.mxu0
        %v1294 = vsel %vm1003, %v1264, -inf
        %1295 = vmax.xlane.f32.xlu0 %v1294
        %v1296 = vpop.xlane.xlu0 %1295
        %v1297 = vsel %vm1003, %v1267, -inf
        %1298 = vmax.xlane.f32.xlu0 %v1297
        %v1299 = vpop.xlane.xlu0 %1298
        %v1300 = vsel %vm1003, %v1272, -inf
        %1301 = vmax.xlane.f32.xlu0 %v1300
        %v1302 = vpop.xlane.xlu0 %1301
        %v1303 = vsel %vm1003, %v1275, -inf
        %1304 = vmax.xlane.f32.xlu0 %v1303
        %v1305 = vpop.xlane.xlu0 %1304
        %v1306 = vsel %vm1003, %v1280, -inf
        %1307 = vmax.xlane.f32.xlu0 %v1306
        %v1308 = vpop.xlane.xlu0 %1307
        %v1309 = vsel %vm1003, %v1283, -inf
        %1310 = vmax.xlane.f32.xlu0 %v1309
        %v1311 = vpop.xlane.xlu0 %1310
        %v1312 = vsel %vm1003, %v1288, -inf
        %1313 = vmax.xlane.f32.xlu0 %v1312
        %v1314 = vpop.xlane.xlu0 %1313
        %v1315 = vsel %vm1003, %v1291, -inf
        %1316 = vmax.xlane.f32.xlu0 %v1315
        %v1317 = vpop.xlane.xlu0 %1316
        %v1318 = vsub.f32 %v1264, %v1296
        %v1319 = vsub.f32 %v1267, %v1299
        %v1320 = vsub.f32 %v1272, %v1302
        %v1321 = vsub.f32 %v1275, %v1305
        %v1322 = vsub.f32 %v1280, %v1308
        %v1323 = vsub.f32 %v1283, %v1311
        %v1324 = vsub.f32 %v1288, %v1314
        %v1325 = vsub.f32 %v1291, %v1317
        %v1326 = vmul.f32 %v1318, 1.442695
        %v1327 = vpow.pop %v1326
        %v1328 = vmul.f32 %v1319, 1.442695
        %v1329 = vpow.pop %v1328
        %v1330 = vmul.f32 %v1320, 1.442695
        %v1331 = vpow.pop %v1330
        %v1332 = vmul.f32 %v1321, 1.442695
        %v1333 = vpow.pop %v1332
        %v1334 = vmul.f32 %v1322, 1.442695
        %v1335 = vpow.pop %v1334
        %v1336 = vmul.f32 %v1323, 1.442695
        %v1337 = vpow.pop %v1336
        %v1338 = vmul.f32 %v1324, 1.442695
        %v1339 = vpow.pop %v1338
        %v1340 = vmul.f32 %v1325, 1.442695
        %v1341 = vpow.pop %v1340
        %v1342 = vsel %vm1003, %v1327, 0.0
        %1343 = vadd.xlane.f32.xlu0 %v1342
        %v1344 = vpop.xlane.xlu0 %1343
        %v1345 = vsel %vm1003, %v1329, 0.0
        %1346 = vadd.xlane.f32.xlu0 %v1345
        %v1347 = vpop.xlane.xlu0 %1346
        %v1348 = vsel %vm1003, %v1331, 0.0
        %1349 = vadd.xlane.f32.xlu0 %v1348
        %v1350 = vpop.xlane.xlu0 %1349
        %v1351 = vsel %vm1003, %v1333, 0.0
        %1352 = vadd.xlane.f32.xlu0 %v1351
        %v1353 = vpop.xlane.xlu0 %1352
        %v1354 = vsel %vm1003, %v1335, 0.0
        %1355 = vadd.xlane.f32.xlu0 %v1354
        %v1356 = vpop.xlane.xlu0 %1355
        %v1357 = vsel %vm1003, %v1337, 0.0
        %1358 = vadd.xlane.f32.xlu0 %v1357
        %v1359 = vpop.xlane.xlu0 %1358
        %v1360 = vsel %vm1003, %v1339, 0.0
        %1361 = vadd.xlane.f32.xlu0 %v1360
        %v1362 = vpop.xlane.xlu0 %1361
        %v1363 = vsel %vm1003, %v1341, 0.0
        %1364 = vadd.xlane.f32.xlu0 %v1363
        %v1365 = vpop.xlane.xlu0 %1364
        %v1366 = vrcp.pop %v1344
        %v1367 = vrcp.pop %v1347
        %v1368 = vrcp.pop %v1350
        %v1369 = vrcp.pop %v1353
        %v1370 = vrcp.pop %v1356
        %v1371 = vrcp.pop %v1359
        %v1372 = vrcp.pop %v1362
        %v1373 = vrcp.pop %v1365
        %v1374 = vmul.f32 %v1327, %v1366
        %v1375 = vmul.f32 %v1329, %v1367
        %v1376 = vmul.f32 %v1331, %v1368
        %v1377 = vmul.f32 %v1333, %v1369
        %v1378 = vmul.f32 %v1335, %v1370
        %v1379 = vmul.f32 %v1337, %v1371
        %v1380 = vmul.f32 %v1339, %v1372
        %v1381 = vmul.f32 %v1341, %v1373
        %v1382 = vpack.c.bf16 %v1375, %v1374
        %v1383 = vpack.c.bf16 %v1377, %v1376
        %v1384 = vpack.c.bf16 %v1379, %v1378
        %v1385 = vpack.c.bf16 %v1381, %v1380
        %1386 = vrot.lane.b32.xlu0 %v762, 56
        %v1387 = vpop.permute.xlu0 %1386
        %1388 = vrot.lane.b32.xlu0 %v763, 56
        %v1389 = vpop.permute.xlu0 %1388
        %1390 = vrot.lane.b32.xlu0 %v764, 56
        %v1391 = vpop.permute.xlu0 %1390
        %1392 = vrot.lane.b32.xlu0 %v765, 56
        %v1393 = vpop.permute.xlu0 %1392
        %v1399 = vsel %vm1003, %v1382, 0
        %v1402 = vsel %vm1003, %v1383, 0
        %v1405 = vsel %vm1003, %v1384, 0
        %v1408 = vsel %vm1003, %v1385, 0
        %1410 = vmatprep.subr.bf16.mxu0 0
        %1411 = vmatpush1.bf16.msra.mxu0 %v1387
        %1412 = vmatprep.subr.bf16.mxu0 0
        %1413 = vmatpush1.bf16.msra.mxu0 %v1389
        %1414 = vmatprep.subr.bf16.mxu0 0
        %1415 = vmatpush1.bf16.msra.mxu0 %v1391
        %1416 = vmatprep.subr.bf16.mxu0 0
        %1417 = vmatpush1.bf16.msra.mxu0 %v1393
        %1418 = vmatprep.subr.bf16.mxu0 0
        %1419 = vmatpush1.bf16.msra.mxu0 0
        %1420 = vmatprep.subr.bf16.mxu0 0
        %1421 = vmatpush1.bf16.msra.mxu0 0
        %1422 = vmatprep.subr.bf16.mxu0 0
        %1423 = vmatpush1.bf16.msra.mxu0 0
        %1424 = vmatprep.subr.bf16.mxu0 0
        %1425 = vmatpush1.bf16.msra.mxu0 0
        %1426 = vmatprep.subr.bf16.mxu0 0
        %1427 = vmatpush1.bf16.msra.mxu0 0
        %1428 = vmatprep.subr.bf16.mxu0 0
        %1429 = vmatpush1.bf16.msra.mxu0 0
        %1430 = vmatprep.subr.bf16.mxu0 0
        %1431 = vmatpush1.bf16.msra.mxu0 0
        %1432 = vmatprep.subr.bf16.mxu0 0
        %1433 = vmatpush1.bf16.msra.mxu0 0
        %1434 = vmatprep.subr.bf16.mxu0 0
        %1435 = vmatpush1.bf16.msra.mxu0 0
        %1436 = vmatprep.subr.bf16.mxu0 0
        %1437 = vmatpush1.bf16.msra.mxu0 0
        %1438 = vmatprep.subr.bf16.mxu0 0
        %1439 = vmatpush1.bf16.msra.mxu0 0
        %1440 = vmatprep.subr.bf16.mxu0 0
        %1441 = vmatpush1.bf16.msra.mxu0 0
        %1442 = vmatprep.mubr.bf16.mxu0 0
        %1443 = vmatmul.mubr.bf16.gmra.mrb[0].mxu0 %v1399
        %v1444 = vpop.f32.mrb[0].mxu0
        %v1445 = vadd.f32 0.0, %v1444
        %v1446 = vpop.f32.mrb[0].mxu0
        %v1447 = vpop.f32.mrb[0].mxu0
        %v1448 = vadd.f32 0.0, %v1447
        %v1449 = vpop.f32.mrb[0].mxu0
        %1450 = vmatprep.mubr.bf16.mxu0 0
        %1451 = vmatmul.mubr.bf16.gmra.mrb[0].mxu0 %v1402
        %v1452 = vpop.f32.mrb[0].mxu0
        %v1453 = vadd.f32 0.0, %v1452
        %v1454 = vpop.f32.mrb[0].mxu0
        %v1455 = vpop.f32.mrb[0].mxu0
        %v1456 = vadd.f32 0.0, %v1455
        %v1457 = vpop.f32.mrb[0].mxu0
        %1458 = vmatprep.mubr.bf16.mxu0 0
        %1459 = vmatmul.mubr.bf16.gmra.mrb[0].mxu0 %v1405
        %v1460 = vpop.f32.mrb[0].mxu0
        %v1461 = vadd.f32 0.0, %v1460
        %v1462 = vpop.f32.mrb[0].mxu0
        %v1463 = vpop.f32.mrb[0].mxu0
        %v1464 = vadd.f32 0.0, %v1463
        %v1465 = vpop.f32.mrb[0].mxu0
        %1466 = vmatprep.mubr.bf16.mxu0 0
        %1467 = vmatmul.mubr.bf16.gmra.mrb[0].mxu0 %v1408
        %v1468 = vpop.f32.mrb[0].mxu0
        %v1469 = vadd.f32 0.0, %v1468
        %v1470 = vpop.f32.mrb[0].mxu0
        %v1471 = vpop.f32.mrb[0].mxu0
        %v1472 = vadd.f32 0.0, %v1471
        %v1473 = vpop.f32.mrb[0].mxu0
        %1474 = vdwg.mxu0
        %1475 = vrot.lane.b32.xlu0 %v758, 112
        %v1476 = vpop.permute.xlu0 %1475
        %1477 = vrot.lane.b32.xlu0 %v759, 112
        %v1478 = vpop.permute.xlu0 %1477
        %1479 = vrot.lane.b32.xlu0 %v760, 112
        %v1480 = vpop.permute.xlu0 %1479
        %1481 = vrot.lane.b32.xlu0 %v761, 112
        %v1482 = vpop.permute.xlu0 %1481
        %1483 = vrot.lane.b32.xlu0 %v762, 80
        %v1484 = vpop.permute.xlu0 %1483
        %1485 = vrot.lane.b32.xlu0 %v763, 80
        %v1486 = vpop.permute.xlu0 %1485
        %1487 = vrot.lane.b32.xlu0 %v764, 80
        %v1488 = vpop.permute.xlu0 %1487
        %1489 = vrot.lane.b32.xlu0 %v765, 80
        %v1490 = vpop.permute.xlu0 %1489
        %v1492 = vsel %vm913, %v1476, 0
        %v1495 = vsel %vm913, %v1478, 0
        %v1498 = vsel %vm913, %v1480, 0
        %v1501 = vsel %vm913, %v1482, 0
        %v1504 = vsel %vm913, %v1484, 0
        %v1507 = vsel %vm913, %v1486, 0
        %v1510 = vsel %vm913, %v1488, 0
        %v1513 = vsel %vm913, %v1490, 0
        %1515 = vmatprep.subr.bf16.mxu0 0
        %1516 = vmatpush1.bf16.xpose.msra.mxu0 %v1504
        %1517 = vmatprep.subr.bf16.mxu0 0
        %1518 = vmatpush1.bf16.xpose.msra.mxu0 %v1507
        %1519 = vmatprep.subr.bf16.mxu0 0
        %1520 = vmatpush1.bf16.xpose.msra.mxu0 %v1510
        %1521 = vmatprep.subr.bf16.mxu0 0
        %1522 = vmatpush1.bf16.xpose.msra.mxu0 %v1513
        %1523 = vmatprep.subr.bf16.mxu0 0
        %1524 = vmatpush1.bf16.xpose.msra.mxu0 0
        %1525 = vmatprep.subr.bf16.mxu0 0
        %1526 = vmatpush1.bf16.xpose.msra.mxu0 0
        %1527 = vmatprep.subr.bf16.mxu0 0
        %1528 = vmatpush1.bf16.xpose.msra.mxu0 0
        %1529 = vmatprep.subr.bf16.mxu0 0
        %1530 = vmatpush1.bf16.xpose.msra.mxu0 0
        %1531 = vmatprep.subr.bf16.mxu0 0
        %1532 = vmatpush1.bf16.xpose.msra.mxu0 0
        %1533 = vmatprep.subr.bf16.mxu0 0
        %1534 = vmatpush1.bf16.xpose.msra.mxu0 0
        %1535 = vmatprep.subr.bf16.mxu0 0
        %1536 = vmatpush1.bf16.xpose.msra.mxu0 0
        %1537 = vmatprep.subr.bf16.mxu0 0
        %1538 = vmatpush1.bf16.xpose.msra.mxu0 0
        %1539 = vmatprep.subr.bf16.mxu0 0
        %1540 = vmatpush1.bf16.xpose.msra.mxu0 0
        %1541 = vmatprep.subr.bf16.mxu0 0
        %1542 = vmatpush1.bf16.xpose.msra.mxu0 0
        %1543 = vmatprep.subr.bf16.mxu0 0
        %1544 = vmatpush1.bf16.xpose.msra.mxu0 0
        %1545 = vmatprep.subr.bf16.mxu0 0
        %1546 = vmatpush1.bf16.xpose.msra.mxu0 0
        %1547 = vmatprep.mubr.bf16.mxu0 0
        %1548 = vmatmul.mubr.bf16.gmra.mrb[0].mxu0 %v1492
        %v1549 = vpop.f32.mrb[0].mxu0
        %v1550 = vadd.f32 %v893, %v1549
        %v1551 = vpop.f32.mrb[0].mxu0
        %v1552 = vpop.f32.mrb[0].mxu0
        %v1553 = vadd.f32 %v894, %v1552
        %v1554 = vpop.f32.mrb[0].mxu0
        %1555 = vmatprep.mubr.bf16.mxu0 0
        %1556 = vmatmul.mubr.bf16.gmra.mrb[0].mxu0 %v1495
        %v1557 = vpop.f32.mrb[0].mxu0
        %v1558 = vadd.f32 %v895, %v1557
        %v1559 = vpop.f32.mrb[0].mxu0
        %v1560 = vpop.f32.mrb[0].mxu0
        %v1561 = vadd.f32 %v896, %v1560
        %v1562 = vpop.f32.mrb[0].mxu0
        %1563 = vmatprep.mubr.bf16.mxu0 0
        %1564 = vmatmul.mubr.bf16.gmra.mrb[0].mxu0 %v1498
        %v1565 = vpop.f32.mrb[0].mxu0
        %v1566 = vadd.f32 %v897, %v1565
        %v1567 = vpop.f32.mrb[0].mxu0
        %v1568 = vpop.f32.mrb[0].mxu0
        %v1569 = vadd.f32 %v898, %v1568
        %v1570 = vpop.f32.mrb[0].mxu0
        %1571 = vmatprep.mubr.bf16.mxu0 0
        %1572 = vmatmul.mubr.bf16.gmra.mrb[0].mxu0 %v1501
        %v1573 = vpop.f32.mrb[0].mxu0
        %v1574 = vadd.f32 %v899, %v1573
        %v1575 = vpop.f32.mrb[0].mxu0
        %v1576 = vpop.f32.mrb[0].mxu0
        %v1577 = vadd.f32 %v900, %v1576
        %v1578 = vpop.f32.mrb[0].mxu0
        %1579 = vdwg.mxu0
        %v1580 = vsel %vm1003, %v1550, -inf
        %1581 = vmax.xlane.f32.xlu0 %v1580
        %v1582 = vpop.xlane.xlu0 %1581
        %v1583 = vsel %vm1003, %v1553, -inf
        %1584 = vmax.xlane.f32.xlu0 %v1583
        %v1585 = vpop.xlane.xlu0 %1584
        %v1586 = vsel %vm1003, %v1558, -inf
        %1587 = vmax.xlane.f32.xlu0 %v1586
        %v1588 = vpop.xlane.xlu0 %1587
        %v1589 = vsel %vm1003, %v1561, -inf
        %1590 = vmax.xlane.f32.xlu0 %v1589
        %v1591 = vpop.xlane.xlu0 %1590
        %v1592 = vsel %vm1003, %v1566, -inf
        %1593 = vmax.xlane.f32.xlu0 %v1592
        %v1594 = vpop.xlane.xlu0 %1593
        %v1595 = vsel %vm1003, %v1569, -inf
        %1596 = vmax.xlane.f32.xlu0 %v1595
        %v1597 = vpop.xlane.xlu0 %1596
        %v1598 = vsel %vm1003, %v1574, -inf
        %1599 = vmax.xlane.f32.xlu0 %v1598
        %v1600 = vpop.xlane.xlu0 %1599
        %v1601 = vsel %vm1003, %v1577, -inf
        %1602 = vmax.xlane.f32.xlu0 %v1601
        %v1603 = vpop.xlane.xlu0 %1602
        %v1604 = vsub.f32 %v1550, %v1582
        %v1605 = vsub.f32 %v1553, %v1585
        %v1606 = vsub.f32 %v1558, %v1588
        %v1607 = vsub.f32 %v1561, %v1591
        %v1608 = vsub.f32 %v1566, %v1594
        %v1609 = vsub.f32 %v1569, %v1597
        %v1610 = vsub.f32 %v1574, %v1600
        %v1611 = vsub.f32 %v1577, %v1603
        %v1612 = vmul.f32 %v1604, 1.442695
        %v1613 = vpow.pop %v1612
        %v1614 = vmul.f32 %v1605, 1.442695
        %v1615 = vpow.pop %v1614
        %v1616 = vmul.f32 %v1606, 1.442695
        %v1617 = vpow.pop %v1616
        %v1618 = vmul.f32 %v1607, 1.442695
        %v1619 = vpow.pop %v1618
        %v1620 = vmul.f32 %v1608, 1.442695
        %v1621 = vpow.pop %v1620
        %v1622 = vmul.f32 %v1609, 1.442695
        %v1623 = vpow.pop %v1622
        %v1624 = vmul.f32 %v1610, 1.442695
        %v1625 = vpow.pop %v1624
        %v1626 = vmul.f32 %v1611, 1.442695
        %v1627 = vpow.pop %v1626
        %v1628 = vsel %vm1003, %v1613, 0.0
        %1629 = vadd.xlane.f32.xlu0 %v1628
        %v1630 = vpop.xlane.xlu0 %1629
        %v1631 = vsel %vm1003, %v1615, 0.0
        %1632 = vadd.xlane.f32.xlu0 %v1631
        %v1633 = vpop.xlane.xlu0 %1632
        %v1634 = vsel %vm1003, %v1617, 0.0
        %1635 = vadd.xlane.f32.xlu0 %v1634
        %v1636 = vpop.xlane.xlu0 %1635
        %v1637 = vsel %vm1003, %v1619, 0.0
        %1638 = vadd.xlane.f32.xlu0 %v1637
        %v1639 = vpop.xlane.xlu0 %1638
        %v1640 = vsel %vm1003, %v1621, 0.0
        %1641 = vadd.xlane.f32.xlu0 %v1640
        %v1642 = vpop.xlane.xlu0 %1641
        %v1643 = vsel %vm1003, %v1623, 0.0
        %1644 = vadd.xlane.f32.xlu0 %v1643
        %v1645 = vpop.xlane.xlu0 %1644
        %v1646 = vsel %vm1003, %v1625, 0.0
        %1647 = vadd.xlane.f32.xlu0 %v1646
        %v1648 = vpop.xlane.xlu0 %1647
        %v1649 = vsel %vm1003, %v1627, 0.0
        %1650 = vadd.xlane.f32.xlu0 %v1649
        %v1651 = vpop.xlane.xlu0 %1650
        %v1652 = vrcp.pop %v1630
        %v1653 = vrcp.pop %v1633
        %v1654 = vrcp.pop %v1636
        %v1655 = vrcp.pop %v1639
        %v1656 = vrcp.pop %v1642
        %v1657 = vrcp.pop %v1645
        %v1658 = vrcp.pop %v1648
        %v1659 = vrcp.pop %v1651
        %v1660 = vmul.f32 %v1613, %v1652
        %v1661 = vmul.f32 %v1615, %v1653
        %v1662 = vmul.f32 %v1617, %v1654
        %v1663 = vmul.f32 %v1619, %v1655
        %v1664 = vmul.f32 %v1621, %v1656
        %v1665 = vmul.f32 %v1623, %v1657
        %v1666 = vmul.f32 %v1625, %v1658
        %v1667 = vmul.f32 %v1627, %v1659
        %v1668 = vpack.c.bf16 %v1661, %v1660
        %v1669 = vpack.c.bf16 %v1663, %v1662
        %v1670 = vpack.c.bf16 %v1665, %v1664
        %v1671 = vpack.c.bf16 %v1667, %v1666
        %1672 = vrot.lane.b32.xlu0 %v762, 48
        %v1673 = vpop.permute.xlu0 %1672
        %1674 = vrot.lane.b32.xlu0 %v763, 48
        %v1675 = vpop.permute.xlu0 %1674
        %1676 = vrot.lane.b32.xlu0 %v764, 48
        %v1677 = vpop.permute.xlu0 %1676
        %1678 = vrot.lane.b32.xlu0 %v765, 48
        %v1679 = vpop.permute.xlu0 %1678
        %v1685 = vsel %vm1003, %v1668, 0
        %v1688 = vsel %vm1003, %v1669, 0
        %v1691 = vsel %vm1003, %v1670, 0
        %v1694 = vsel %vm1003, %v1671, 0
        %1696 = vmatprep.subr.bf16.mxu0 0
        %1697 = vmatpush1.bf16.msra.mxu0 %v1673
        %1698 = vmatprep.subr.bf16.mxu0 0
        %1699 = vmatpush1.bf16.msra.mxu0 %v1675
        %1700 = vmatprep.subr.bf16.mxu0 0
        %1701 = vmatpush1.bf16.msra.mxu0 %v1677
        %1702 = vmatprep.subr.bf16.mxu0 0
        %1703 = vmatpush1.bf16.msra.mxu0 %v1679
        %1704 = vmatprep.subr.bf16.mxu0 0
        %1705 = vmatpush1.bf16.msra.mxu0 0
        %1706 = vmatprep.subr.bf16.mxu0 0
        %1707 = vmatpush1.bf16.msra.mxu0 0
        %1708 = vmatprep.subr.bf16.mxu0 0
        %1709 = vmatpush1.bf16.msra.mxu0 0
        %1710 = vmatprep.subr.bf16.mxu0 0
        %1711 = vmatpush1.bf16.msra.mxu0 0
        %1712 = vmatprep.subr.bf16.mxu0 0
        %1713 = vmatpush1.bf16.msra.mxu0 0
        %1714 = vmatprep.subr.bf16.mxu0 0
        %1715 = vmatpush1.bf16.msra.mxu0 0
        %1716 = vmatprep.subr.bf16.mxu0 0
        %1717 = vmatpush1.bf16.msra.mxu0 0
        %1718 = vmatprep.subr.bf16.mxu0 0
        %1719 = vmatpush1.bf16.msra.mxu0 0
        %1720 = vmatprep.subr.bf16.mxu0 0
        %1721 = vmatpush1.bf16.msra.mxu0 0
        %1722 = vmatprep.subr.bf16.mxu0 0
        %1723 = vmatpush1.bf16.msra.mxu0 0
        %1724 = vmatprep.subr.bf16.mxu0 0
        %1725 = vmatpush1.bf16.msra.mxu0 0
        %1726 = vmatprep.subr.bf16.mxu0 0
        %1727 = vmatpush1.bf16.msra.mxu0 0
        %1728 = vmatprep.mubr.bf16.mxu0 0
        %1729 = vmatmul.mubr.bf16.gmra.mrb[0].mxu0 %v1685
        %v1730 = vpop.f32.mrb[0].mxu0
        %v1731 = vadd.f32 0.0, %v1730
        %v1732 = vpop.f32.mrb[0].mxu0
        %v1733 = vpop.f32.mrb[0].mxu0
        %v1734 = vadd.f32 0.0, %v1733
        %v1735 = vpop.f32.mrb[0].mxu0
        %1736 = vmatprep.mubr.bf16.mxu0 0
        %1737 = vmatmul.mubr.bf16.gmra.mrb[0].mxu0 %v1688
        %v1738 = vpop.f32.mrb[0].mxu0
        %v1739 = vadd.f32 0.0, %v1738
        %v1740 = vpop.f32.mrb[0].mxu0
        %v1741 = vpop.f32.mrb[0].mxu0
        %v1742 = vadd.f32 0.0, %v1741
        %v1743 = vpop.f32.mrb[0].mxu0
        %1744 = vmatprep.mubr.bf16.mxu0 0
        %1745 = vmatmul.mubr.bf16.gmra.mrb[0].mxu0 %v1691
        %v1746 = vpop.f32.mrb[0].mxu0
        %v1747 = vadd.f32 0.0, %v1746
        %v1748 = vpop.f32.mrb[0].mxu0
        %v1749 = vpop.f32.mrb[0].mxu0
        %v1750 = vadd.f32 0.0, %v1749
        %v1751 = vpop.f32.mrb[0].mxu0
        %1752 = vmatprep.mubr.bf16.mxu0 0
        %1753 = vmatmul.mubr.bf16.gmra.mrb[0].mxu0 %v1694
        %v1754 = vpop.f32.mrb[0].mxu0
        %v1755 = vadd.f32 0.0, %v1754
        %v1756 = vpop.f32.mrb[0].mxu0
        %v1757 = vpop.f32.mrb[0].mxu0
        %v1758 = vadd.f32 0.0, %v1757
        %v1759 = vpop.f32.mrb[0].mxu0
        %1760 = vdwg.mxu0
        %1761 = vrot.lane.b32.xlu0 %v758, 104
        %v1762 = vpop.permute.xlu0 %1761
        %1763 = vrot.lane.b32.xlu0 %v759, 104
        %v1764 = vpop.permute.xlu0 %1763
        %1765 = vrot.lane.b32.xlu0 %v760, 104
        %v1766 = vpop.permute.xlu0 %1765
        %1767 = vrot.lane.b32.xlu0 %v761, 104
        %v1768 = vpop.permute.xlu0 %1767
        %1769 = vrot.lane.b32.xlu0 %v762, 72
        %v1770 = vpop.permute.xlu0 %1769
        %1771 = vrot.lane.b32.xlu0 %v763, 72
        %v1772 = vpop.permute.xlu0 %1771
        %1773 = vrot.lane.b32.xlu0 %v764, 72
        %v1774 = vpop.permute.xlu0 %1773
        %1775 = vrot.lane.b32.xlu0 %v765, 72
        %v1776 = vpop.permute.xlu0 %1775
        %v1778 = vsel %vm913, %v1762, 0
        %v1781 = vsel %vm913, %v1764, 0
        %v1784 = vsel %vm913, %v1766, 0
        %v1787 = vsel %vm913, %v1768, 0
        %v1790 = vsel %vm913, %v1770, 0
        %v1793 = vsel %vm913, %v1772, 0
        %v1796 = vsel %vm913, %v1774, 0
        %v1799 = vsel %vm913, %v1776, 0
        %1801 = vmatprep.subr.bf16.mxu0 0
        %1802 = vmatpush1.bf16.xpose.msra.mxu0 %v1790
        %1803 = vmatprep.subr.bf16.mxu0 0
        %1804 = vmatpush1.bf16.xpose.msra.mxu0 %v1793
        %1805 = vmatprep.subr.bf16.mxu0 0
        %1806 = vmatpush1.bf16.xpose.msra.mxu0 %v1796
        %1807 = vmatprep.subr.bf16.mxu0 0
        %1808 = vmatpush1.bf16.xpose.msra.mxu0 %v1799
        %1809 = vmatprep.subr.bf16.mxu0 0
        %1810 = vmatpush1.bf16.xpose.msra.mxu0 0
        %1811 = vmatprep.subr.bf16.mxu0 0
        %1812 = vmatpush1.bf16.xpose.msra.mxu0 0
        %1813 = vmatprep.subr.bf16.mxu0 0
        %1814 = vmatpush1.bf16.xpose.msra.mxu0 0
        %1815 = vmatprep.subr.bf16.mxu0 0
        %1816 = vmatpush1.bf16.xpose.msra.mxu0 0
        %1817 = vmatprep.subr.bf16.mxu0 0
        %1818 = vmatpush1.bf16.xpose.msra.mxu0 0
        %1819 = vmatprep.subr.bf16.mxu0 0
        %1820 = vmatpush1.bf16.xpose.msra.mxu0 0
        %1821 = vmatprep.subr.bf16.mxu0 0
        %1822 = vmatpush1.bf16.xpose.msra.mxu0 0
        %1823 = vmatprep.subr.bf16.mxu0 0
        %1824 = vmatpush1.bf16.xpose.msra.mxu0 0
        %1825 = vmatprep.subr.bf16.mxu0 0
        %1826 = vmatpush1.bf16.xpose.msra.mxu0 0
        %1827 = vmatprep.subr.bf16.mxu0 0
        %1828 = vmatpush1.bf16.xpose.msra.mxu0 0
        %1829 = vmatprep.subr.bf16.mxu0 0
        %1830 = vmatpush1.bf16.xpose.msra.mxu0 0
        %1831 = vmatprep.subr.bf16.mxu0 0
        %1832 = vmatpush1.bf16.xpose.msra.mxu0 0
        %1833 = vmatprep.mubr.bf16.mxu0 0
        %1834 = vmatmul.mubr.bf16.gmra.mrb[0].mxu0 %v1778
        %v1835 = vpop.f32.mrb[0].mxu0
        %v1836 = vadd.f32 %v893, %v1835
        %v1837 = vpop.f32.mrb[0].mxu0
        %v1838 = vpop.f32.mrb[0].mxu0
        %v1839 = vadd.f32 %v894, %v1838
        %v1840 = vpop.f32.mrb[0].mxu0
        %1841 = vmatprep.mubr.bf16.mxu0 0
        %1842 = vmatmul.mubr.bf16.gmra.mrb[0].mxu0 %v1781
        %v1843 = vpop.f32.mrb[0].mxu0
        %v1844 = vadd.f32 %v895, %v1843
        %v1845 = vpop.f32.mrb[0].mxu0
        %v1846 = vpop.f32.mrb[0].mxu0
        %v1847 = vadd.f32 %v896, %v1846
        %v1848 = vpop.f32.mrb[0].mxu0
        %1849 = vmatprep.mubr.bf16.mxu0 0
        %1850 = vmatmul.mubr.bf16.gmra.mrb[0].mxu0 %v1784
        %v1851 = vpop.f32.mrb[0].mxu0
        %v1852 = vadd.f32 %v897, %v1851
        %v1853 = vpop.f32.mrb[0].mxu0
        %v1854 = vpop.f32.mrb[0].mxu0
        %v1855 = vadd.f32 %v898, %v1854
        %v1856 = vpop.f32.mrb[0].mxu0
        %1857 = vmatprep.mubr.bf16.mxu0 0
        %1858 = vmatmul.mubr.bf16.gmra.mrb[0].mxu0 %v1787
        %v1859 = vpop.f32.mrb[0].mxu0
        %v1860 = vadd.f32 %v899, %v1859
        %v1861 = vpop.f32.mrb[0].mxu0
        %v1862 = vpop.f32.mrb[0].mxu0
        %v1863 = vadd.f32 %v900, %v1862
        %v1864 = vpop.f32.mrb[0].mxu0
        %1865 = vdwg.mxu0
        %v1866 = vsel %vm1003, %v1836, -inf
        %1867 = vmax.xlane.f32.xlu0 %v1866
        %v1868 = vpop.xlane.xlu0 %1867
        %v1869 = vsel %vm1003, %v1839, -inf
        %1870 = vmax.xlane.f32.xlu0 %v1869
        %v1871 = vpop.xlane.xlu0 %1870
        %v1872 = vsel %vm1003, %v1844, -inf
        %1873 = vmax.xlane.f32.xlu0 %v1872
        %v1874 = vpop.xlane.xlu0 %1873
        %v1875 = vsel %vm1003, %v1847, -inf
        %1876 = vmax.xlane.f32.xlu0 %v1875
        %v1877 = vpop.xlane.xlu0 %1876
        %v1878 = vsel %vm1003, %v1852, -inf
        %1879 = vmax.xlane.f32.xlu0 %v1878
        %v1880 = vpop.xlane.xlu0 %1879
        %v1881 = vsel %vm1003, %v1855, -inf
        %1882 = vmax.xlane.f32.xlu0 %v1881
        %v1883 = vpop.xlane.xlu0 %1882
        %v1884 = vsel %vm1003, %v1860, -inf
        %1885 = vmax.xlane.f32.xlu0 %v1884
        %v1886 = vpop.xlane.xlu0 %1885
        %v1887 = vsel %vm1003, %v1863, -inf
        %1888 = vmax.xlane.f32.xlu0 %v1887
        %v1889 = vpop.xlane.xlu0 %1888
        %v1890 = vsub.f32 %v1836, %v1868
        %v1891 = vsub.f32 %v1839, %v1871
        %v1892 = vsub.f32 %v1844, %v1874
        %v1893 = vsub.f32 %v1847, %v1877
        %v1894 = vsub.f32 %v1852, %v1880
        %v1895 = vsub.f32 %v1855, %v1883
        %v1896 = vsub.f32 %v1860, %v1886
        %v1897 = vsub.f32 %v1863, %v1889
        %v1898 = vmul.f32 %v1890, 1.442695
        %v1899 = vpow.pop %v1898
        %v1900 = vmul.f32 %v1891, 1.442695
        %v1901 = vpow.pop %v1900
        %v1902 = vmul.f32 %v1892, 1.442695
        %v1903 = vpow.pop %v1902
        %v1904 = vmul.f32 %v1893, 1.442695
        %v1905 = vpow.pop %v1904
        %v1906 = vmul.f32 %v1894, 1.442695
        %v1907 = vpow.pop %v1906
        %v1908 = vmul.f32 %v1895, 1.442695
        %v1909 = vpow.pop %v1908
        %v1910 = vmul.f32 %v1896, 1.442695
        %v1911 = vpow.pop %v1910
        %v1912 = vmul.f32 %v1897, 1.442695
        %v1913 = vpow.pop %v1912
        %v1914 = vsel %vm1003, %v1899, 0.0
        %1915 = vadd.xlane.f32.xlu0 %v1914
        %v1916 = vpop.xlane.xlu0 %1915
        %v1917 = vsel %vm1003, %v1901, 0.0
        %1918 = vadd.xlane.f32.xlu0 %v1917
        %v1919 = vpop.xlane.xlu0 %1918
        %v1920 = vsel %vm1003, %v1903, 0.0
        %1921 = vadd.xlane.f32.xlu0 %v1920
        %v1922 = vpop.xlane.xlu0 %1921
        %v1923 = vsel %vm1003, %v1905, 0.0
        %1924 = vadd.xlane.f32.xlu0 %v1923
        %v1925 = vpop.xlane.xlu0 %1924
        %v1926 = vsel %vm1003, %v1907, 0.0
        %1927 = vadd.xlane.f32.xlu0 %v1926
        %v1928 = vpop.xlane.xlu0 %1927
        %v1929 = vsel %vm1003, %v1909, 0.0
        %1930 = vadd.xlane.f32.xlu0 %v1929
        %v1931 = vpop.xlane.xlu0 %1930
        %v1932 = vsel %vm1003, %v1911, 0.0
        %1933 = vadd.xlane.f32.xlu0 %v1932
        %v1934 = vpop.xlane.xlu0 %1933
        %v1935 = vsel %vm1003, %v1913, 0.0
        %1936 = vadd.xlane.f32.xlu0 %v1935
        %v1937 = vpop.xlane.xlu0 %1936
        %v1938 = vrcp.pop %v1916
        %v1939 = vrcp.pop %v1919
        %v1940 = vrcp.pop %v1922
        %v1941 = vrcp.pop %v1925
        %v1942 = vrcp.pop %v1928
        %v1943 = vrcp.pop %v1931
        %v1944 = vrcp.pop %v1934
        %v1945 = vrcp.pop %v1937
        %v1946 = vmul.f32 %v1899, %v1938
        %v1947 = vmul.f32 %v1901, %v1939
        %v1948 = vmul.f32 %v1903, %v1940
        %v1949 = vmul.f32 %v1905, %v1941
        %v1950 = vmul.f32 %v1907, %v1942
        %v1951 = vmul.f32 %v1909, %v1943
        %v1952 = vmul.f32 %v1911, %v1944
        %v1953 = vmul.f32 %v1913, %v1945
        %v1954 = vpack.c.bf16 %v1947, %v1946
        %v1955 = vpack.c.bf16 %v1949, %v1948
        %v1956 = vpack.c.bf16 %v1951, %v1950
        %v1957 = vpack.c.bf16 %v1953, %v1952
        %1958 = vrot.lane.b32.xlu0 %v762, 40
        %v1959 = vpop.permute.xlu0 %1958
        %1960 = vrot.lane.b32.xlu0 %v763, 40
        %v1961 = vpop.permute.xlu0 %1960
        %1962 = vrot.lane.b32.xlu0 %v764, 40
        %v1963 = vpop.permute.xlu0 %1962
        %1964 = vrot.lane.b32.xlu0 %v765, 40
        %v1965 = vpop.permute.xlu0 %1964
        %v1971 = vsel %vm1003, %v1954, 0
        %v1974 = vsel %vm1003, %v1955, 0
        %v1977 = vsel %vm1003, %v1956, 0
        %v1980 = vsel %vm1003, %v1957, 0
        %1982 = vmatprep.subr.bf16.mxu0 0
        %1983 = vmatpush1.bf16.msra.mxu0 %v1959
        %1984 = vmatprep.subr.bf16.mxu0 0
        %1985 = vmatpush1.bf16.msra.mxu0 %v1961
        %1986 = vmatprep.subr.bf16.mxu0 0
        %1987 = vmatpush1.bf16.msra.mxu0 %v1963
        %1988 = vmatprep.subr.bf16.mxu0 0
        %1989 = vmatpush1.bf16.msra.mxu0 %v1965
        %1990 = vmatprep.subr.bf16.mxu0 0
        %1991 = vmatpush1.bf16.msra.mxu0 0
        %1992 = vmatprep.subr.bf16.mxu0 0
        %1993 = vmatpush1.bf16.msra.mxu0 0
        %1994 = vmatprep.subr.bf16.mxu0 0
        %1995 = vmatpush1.bf16.msra.mxu0 0
        %1996 = vmatprep.subr.bf16.mxu0 0
        %1997 = vmatpush1.bf16.msra.mxu0 0
        %1998 = vmatprep.subr.bf16.mxu0 0
        %1999 = vmatpush1.bf16.msra.mxu0 0
        %2000 = vmatprep.subr.bf16.mxu0 0
        %2001 = vmatpush1.bf16.msra.mxu0 0
        %2002 = vmatprep.subr.bf16.mxu0 0
        %2003 = vmatpush1.bf16.msra.mxu0 0
        %2004 = vmatprep.subr.bf16.mxu0 0
        %2005 = vmatpush1.bf16.msra.mxu0 0
        %2006 = vmatprep.subr.bf16.mxu0 0
        %2007 = vmatpush1.bf16.msra.mxu0 0
        %2008 = vmatprep.subr.bf16.mxu0 0
        %2009 = vmatpush1.bf16.msra.mxu0 0
        %2010 = vmatprep.subr.bf16.mxu0 0
        %2011 = vmatpush1.bf16.msra.mxu0 0
        %2012 = vmatprep.subr.bf16.mxu0 0
        %2013 = vmatpush1.bf16.msra.mxu0 0
        %2014 = vmatprep.mubr.bf16.mxu0 0
        %2015 = vmatmul.mubr.bf16.gmra.mrb[0].mxu0 %v1971
        %v2016 = vpop.f32.mrb[0].mxu0
        %v2017 = vadd.f32 0.0, %v2016
        %v2018 = vpop.f32.mrb[0].mxu0
        %v2019 = vpop.f32.mrb[0].mxu0
        %v2020 = vadd.f32 0.0, %v2019
        %v2021 = vpop.f32.mrb[0].mxu0
        %2022 = vmatprep.mubr.bf16.mxu0 0
        %2023 = vmatmul.mubr.bf16.gmra.mrb[0].mxu0 %v1974
        %v2024 = vpop.f32.mrb[0].mxu0
        %v2025 = vadd.f32 0.0, %v2024
        %v2026 = vpop.f32.mrb[0].mxu0
        %v2027 = vpop.f32.mrb[0].mxu0
        %v2028 = vadd.f32 0.0, %v2027
        %v2029 = vpop.f32.mrb[0].mxu0
        %2030 = vmatprep.mubr.bf16.mxu0 0
        %2031 = vmatmul.mubr.bf16.gmra.mrb[0].mxu0 %v1977
        %v2032 = vpop.f32.mrb[0].mxu0
        %v2033 = vadd.f32 0.0, %v2032
        %v2034 = vpop.f32.mrb[0].mxu0
        %v2035 = vpop.f32.mrb[0].mxu0
        %v2036 = vadd.f32 0.0, %v2035
        %v2037 = vpop.f32.mrb[0].mxu0
        %2038 = vmatprep.mubr.bf16.mxu0 0
        %2039 = vmatmul.mubr.bf16.gmra.mrb[0].mxu0 %v1980
        %v2040 = vpop.f32.mrb[0].mxu0
        %v2041 = vadd.f32 0.0, %v2040
        %v2042 = vpop.f32.mrb[0].mxu0
        %v2043 = vpop.f32.mrb[0].mxu0
        %v2044 = vadd.f32 0.0, %v2043
        %v2045 = vpop.f32.mrb[0].mxu0
        %2046 = vdwg.mxu0
        %2055 = vrot.lane.b32.xlu0 %v1445, 8
        %v2056 = vpop.permute.xlu0 %2055
        %2057 = vrot.lane.b32.xlu0 %v1448, 8
        %v2058 = vpop.permute.xlu0 %2057
        %2059 = vrot.lane.b32.xlu0 %v1453, 8
        %v2060 = vpop.permute.xlu0 %2059
        %2061 = vrot.lane.b32.xlu0 %v1456, 8
        %v2062 = vpop.permute.xlu0 %2061
        %2063 = vrot.lane.b32.xlu0 %v1461, 8
        %v2064 = vpop.permute.xlu0 %2063
        %2065 = vrot.lane.b32.xlu0 %v1464, 8
        %v2066 = vpop.permute.xlu0 %2065
        %2067 = vrot.lane.b32.xlu0 %v1469, 8
        %v2068 = vpop.permute.xlu0 %2067
        %2069 = vrot.lane.b32.xlu0 %v1472, 8
        %v2070 = vpop.permute.xlu0 %2069
        %2087 = vrot.lane.b32.xlu0 %v1731, 16
        %v2088 = vpop.permute.xlu0 %2087
        %2089 = vrot.lane.b32.xlu0 %v1734, 16
        %v2090 = vpop.permute.xlu0 %2089
        %2091 = vrot.lane.b32.xlu0 %v1739, 16
        %v2092 = vpop.permute.xlu0 %2091
        %2093 = vrot.lane.b32.xlu0 %v1742, 16
        %v2094 = vpop.permute.xlu0 %2093
        %2095 = vrot.lane.b32.xlu0 %v1747, 16
        %v2096 = vpop.permute.xlu0 %2095
        %2097 = vrot.lane.b32.xlu0 %v1750, 16
        %v2098 = vpop.permute.xlu0 %2097
        %2099 = vrot.lane.b32.xlu0 %v1755, 16
        %v2100 = vpop.permute.xlu0 %2099
        %2101 = vrot.lane.b32.xlu0 %v1758, 16
        %v2102 = vpop.permute.xlu0 %2101
        %2119 = vrot.lane.b32.xlu0 %v2017, 24
        %v2120 = vpop.permute.xlu0 %2119
        %2121 = vrot.lane.b32.xlu0 %v2020, 24
        %v2122 = vpop.permute.xlu0 %2121
        %2123 = vrot.lane.b32.xlu0 %v2025, 24
        %v2124 = vpop.permute.xlu0 %2123
        %2125 = vrot.lane.b32.xlu0 %v2028, 24
        %v2126 = vpop.permute.xlu0 %2125
        %2127 = vrot.lane.b32.xlu0 %v2033, 24
        %v2128 = vpop.permute.xlu0 %2127
        %2129 = vrot.lane.b32.xlu0 %v2036, 24
        %v2130 = vpop.permute.xlu0 %2129
        %2131 = vrot.lane.b32.xlu0 %v2041, 24
        %v2132 = vpop.permute.xlu0 %2131
        %2133 = vrot.lane.b32.xlu0 %v2044, 24
        %v2134 = vpop.permute.xlu0 %2133
        %v2143 = vsel %vm913, %v1155, %v2056
        %v2144 = vsel %vm913, %v1158, %v2058
        %v2145 = vsel %vm913, %v1163, %v2060
        %v2146 = vsel %vm913, %v1166, %v2062
        %v2147 = vsel %vm913, %v1171, %v2064
        %v2148 = vsel %vm913, %v1174, %v2066
        %v2149 = vsel %vm913, %v1179, %v2068
        %v2150 = vsel %vm913, %v1182, %v2070
        %vm2151 = vcmask 130048
        %v2152 = vsel %vm2151, %v2143, %v2088
        %v2153 = vsel %vm2151, %v2144, %v2090
        %v2154 = vsel %vm2151, %v2145, %v2092
        %v2155 = vsel %vm2151, %v2146, %v2094
        %v2156 = vsel %vm2151, %v2147, %v2096
        %v2157 = vsel %vm2151, %v2148, %v2098
        %v2158 = vsel %vm2151, %v2149, %v2100
        %v2159 = vsel %vm2151, %v2150, %v2102
        %vm2160 = vcmask 195584
        %v2161 = vsel %vm2160, %v2152, %v2120
        %v2162 = vsel %vm2160, %v2153, %v2122
        %v2163 = vsel %vm2160, %v2154, %v2124
        %v2164 = vsel %vm2160, %v2155, %v2126
        %v2165 = vsel %vm2160, %v2156, %v2128
        %v2166 = vsel %vm2160, %v2157, %v2130
        %v2167 = vsel %vm2160, %v2158, %v2132
        %v2168 = vsel %vm2160, %v2159, %v2134
        %v2169 = vpack.c.bf16 %v2162, %v2161
        %v2170 = vpack.c.bf16 %v2164, %v2163
        %v2171 = vpack.c.bf16 %v2166, %v2165
        %v2172 = vpack.c.bf16 %v2168, %v2167
        %v2173 = vld [vmem:[%s5] sm:$0xf]
        %v2174 = vld [vmem:[%s5 + $0x4] sm:$0xf]
        %v2175 = vld [vmem:[%s5 + $0x8] sm:$0xf]
        %v2176 = vld [vmem:[%s5 + $0xc] sm:$0xf]
        %v2177 = vld [vmem:[%s6] sm:$0x1]
        %v2179 = vlaneseq
        %v2180 = vshrl.u32 %v2179, 7
        %v2181 = vsub.s32 0, %v2180
        %v2182 = vrot.slane %v2177, %v2181
        %v2188 = vunpack.c.l.b16 %v2173
        %v2189 = vunpack.c.l.b16 %v2174
        %v2190 = vunpack.c.l.b16 %v2175
        %v2191 = vunpack.c.l.b16 %v2176
        %v2192 = vpack.c.b16 %v2189, %v2188
        %v2193 = vpack.c.b16 %v2191, %v2190
        %v2197 = vsel %vm512, %v2169, 0
        %v2200 = vsel %vm512, %v2170, 0
        %v2203 = vsel %vm512, %v2171, 0
        %v2206 = vsel %vm512, %v2172, 0
        %2208 = vmatprep.subr.bf16.mxu0 0
        %2209 = vmatpush1.bf16.msra.mxu0 %v2192
        %2210 = vmatprep.subr.bf16.mxu0 0
        %2211 = vmatpush1.bf16.msra.mxu0 %v2193
        %2212 = vmatprep.subr.bf16.mxu0 0
        %2213 = vmatpush1.bf16.msra.mxu0 0
        %2214 = vmatprep.subr.bf16.mxu0 0
        %2215 = vmatpush1.bf16.msra.mxu0 0
        %2216 = vmatprep.subr.bf16.mxu0 0
        %2217 = vmatpush1.bf16.msra.mxu0 0
        %2218 = vmatprep.subr.bf16.mxu0 0
        %2219 = vmatpush1.bf16.msra.mxu0 0
        %2220 = vmatprep.subr.bf16.mxu0 0
        %2221 = vmatpush1.bf16.msra.mxu0 0
        %2222 = vmatprep.subr.bf16.mxu0 0
        %2223 = vmatpush1.bf16.msra.mxu0 0
        %2224 = vmatprep.subr.bf16.mxu0 0
        %2225 = vmatpush1.bf16.msra.mxu0 0
        %2226 = vmatprep.subr.bf16.mxu0 0
        %2227 = vmatpush1.bf16.msra.mxu0 0
        %2228 = vmatprep.subr.bf16.mxu0 0
        %2229 = vmatpush1.bf16.msra.mxu0 0
        %2230 = vmatprep.subr.bf16.mxu0 0
        %2231 = vmatpush1.bf16.msra.mxu0 0
        %2232 = vmatprep.subr.bf16.mxu0 0
        %2233 = vmatpush1.bf16.msra.mxu0 0
        %2234 = vmatprep.subr.bf16.mxu0 0
        %2235 = vmatpush1.bf16.msra.mxu0 0
        %2236 = vmatprep.subr.bf16.mxu0 0
        %2237 = vmatpush1.bf16.msra.mxu0 0
        %2238 = vmatprep.subr.bf16.mxu0 0
        %2239 = vmatpush1.bf16.msra.mxu0 0
        %2240 = vmatprep.mubr.bf16.mxu0 0
        %2241 = vmatmul.mubr.bf16.gmra.mrb[0].mxu0 %v2197
        %v2242 = vpop.f32.mrb[0].mxu0
        %v2243 = vadd.f32 %v2182, %v2242
        %v2244 = vpop.f32.mrb[0].mxu0
        %v2245 = vpop.f32.mrb[0].mxu0
        %v2246 = vadd.f32 %v2182, %v2245
        %v2247 = vpop.f32.mrb[0].mxu0
        %2248 = vmatprep.mubr.bf16.mxu0 0
        %2249 = vmatmul.mubr.bf16.gmra.mrb[0].mxu0 %v2200
        %v2250 = vpop.f32.mrb[0].mxu0
        %v2251 = vadd.f32 %v2182, %v2250
        %v2252 = vpop.f32.mrb[0].mxu0
        %v2253 = vpop.f32.mrb[0].mxu0
        %v2254 = vadd.f32 %v2182, %v2253
        %v2255 = vpop.f32.mrb[0].mxu0
        %2256 = vmatprep.mubr.bf16.mxu0 0
        %2257 = vmatmul.mubr.bf16.gmra.mrb[0].mxu0 %v2203
        %v2258 = vpop.f32.mrb[0].mxu0
        %v2259 = vadd.f32 %v2182, %v2258
        %v2260 = vpop.f32.mrb[0].mxu0
        %v2261 = vpop.f32.mrb[0].mxu0
        %v2262 = vadd.f32 %v2182, %v2261
        %v2263 = vpop.f32.mrb[0].mxu0
        %2264 = vmatprep.mubr.bf16.mxu0 0
        %2265 = vmatmul.mubr.bf16.gmra.mrb[0].mxu0 %v2206
        %v2266 = vpop.f32.mrb[0].mxu0
        %v2267 = vadd.f32 %v2182, %v2266
        %v2268 = vpop.f32.mrb[0].mxu0
        %v2269 = vpop.f32.mrb[0].mxu0
        %v2270 = vadd.f32 %v2182, %v2269
        %v2271 = vpop.f32.mrb[0].mxu0
        %2272 = vdwg.mxu0
        %v2273 = vadd.f32 %v502, %v2243
        %v2274 = vadd.f32 %v503, %v2246
        %v2275 = vadd.f32 %v504, %v2251
        %v2276 = vadd.f32 %v505, %v2254
        %v2277 = vadd.f32 %v506, %v2259
        %v2278 = vadd.f32 %v507, %v2262
        %v2279 = vadd.f32 %v508, %v2267
        %v2280 = vadd.f32 %v509, %v2270
        %v2281 = vld [vmem:[%s7] sm:$0x1]
        %v2282 = vld [vmem:[%s8] sm:$0x1]
        %v2283 = vsel %vm512, %v2273, 0.0
        %2284 = vadd.xlane.f32.xlu0 %v2283
        %v2285 = vpop.xlane.xlu0 %2284
        %v2286 = vsel %vm512, %v2274, 0.0
        %2287 = vadd.xlane.f32.xlu0 %v2286
        %v2288 = vpop.xlane.xlu0 %2287
        %v2289 = vsel %vm512, %v2275, 0.0
        %2290 = vadd.xlane.f32.xlu0 %v2289
        %v2291 = vpop.xlane.xlu0 %2290
        %v2292 = vsel %vm512, %v2276, 0.0
        %2293 = vadd.xlane.f32.xlu0 %v2292
        %v2294 = vpop.xlane.xlu0 %2293
        %v2295 = vsel %vm512, %v2277, 0.0
        %2296 = vadd.xlane.f32.xlu0 %v2295
        %v2297 = vpop.xlane.xlu0 %2296
        %v2298 = vsel %vm512, %v2278, 0.0
        %2299 = vadd.xlane.f32.xlu0 %v2298
        %v2300 = vpop.xlane.xlu0 %2299
        %v2301 = vsel %vm512, %v2279, 0.0
        %2302 = vadd.xlane.f32.xlu0 %v2301
        %v2303 = vpop.xlane.xlu0 %2302
        %v2304 = vsel %vm512, %v2280, 0.0
        %2305 = vadd.xlane.f32.xlu0 %v2304
        %v2306 = vpop.xlane.xlu0 %2305
        %v2307 = vmul.f32 %v2285, %v537
        %v2308 = vmul.f32 %v2288, %v537
        %v2309 = vmul.f32 %v2291, %v537
        %v2310 = vmul.f32 %v2294, %v537
        %v2311 = vmul.f32 %v2297, %v537
        %v2312 = vmul.f32 %v2300, %v537
        %v2313 = vmul.f32 %v2303, %v537
        %v2314 = vmul.f32 %v2306, %v537
        %v2315 = vsub.f32 %v2273, %v2307
        %v2316 = vsub.f32 %v2274, %v2308
        %v2317 = vsub.f32 %v2275, %v2309
        %v2318 = vsub.f32 %v2276, %v2310
        %v2319 = vsub.f32 %v2277, %v2311
        %v2320 = vsub.f32 %v2278, %v2312
        %v2321 = vsub.f32 %v2279, %v2313
        %v2322 = vsub.f32 %v2280, %v2314
        %v2323 = vmul.f32 %v2315, %v2315
        %v2324 = vmul.f32 %v2316, %v2316
        %v2325 = vmul.f32 %v2317, %v2317
        %v2326 = vmul.f32 %v2318, %v2318
        %v2327 = vmul.f32 %v2319, %v2319
        %v2328 = vmul.f32 %v2320, %v2320
        %v2329 = vmul.f32 %v2321, %v2321
        %v2330 = vmul.f32 %v2322, %v2322
        %v2331 = vsel %vm512, %v2323, 0.0
        %2332 = vadd.xlane.f32.xlu0 %v2331
        %v2333 = vpop.xlane.xlu0 %2332
        %v2334 = vsel %vm512, %v2324, 0.0
        %2335 = vadd.xlane.f32.xlu0 %v2334
        %v2336 = vpop.xlane.xlu0 %2335
        %v2337 = vsel %vm512, %v2325, 0.0
        %2338 = vadd.xlane.f32.xlu0 %v2337
        %v2339 = vpop.xlane.xlu0 %2338
        %v2340 = vsel %vm512, %v2326, 0.0
        %2341 = vadd.xlane.f32.xlu0 %v2340
        %v2342 = vpop.xlane.xlu0 %2341
        %v2343 = vsel %vm512, %v2327, 0.0
        %2344 = vadd.xlane.f32.xlu0 %v2343
        %v2345 = vpop.xlane.xlu0 %2344
        %v2346 = vsel %vm512, %v2328, 0.0
        %2347 = vadd.xlane.f32.xlu0 %v2346
        %v2348 = vpop.xlane.xlu0 %2347
        %v2349 = vsel %vm512, %v2329, 0.0
        %2350 = vadd.xlane.f32.xlu0 %v2349
        %v2351 = vpop.xlane.xlu0 %2350
        %v2352 = vsel %vm512, %v2330, 0.0
        %2353 = vadd.xlane.f32.xlu0 %v2352
        %v2354 = vpop.xlane.xlu0 %2353
        %v2355 = vmul.f32 %v2333, %v537
        %v2356 = vmul.f32 %v2336, %v537
        %v2357 = vmul.f32 %v2339, %v537
        %v2358 = vmul.f32 %v2342, %v537
        %v2359 = vmul.f32 %v2345, %v537
        %v2360 = vmul.f32 %v2348, %v537
        %v2361 = vmul.f32 %v2351, %v537
        %v2362 = vmul.f32 %v2354, %v537
        %v2363 = vadd.f32 %v2355, 1e-05
        %v2364 = vadd.f32 %v2356, 1e-05
        %v2365 = vadd.f32 %v2357, 1e-05
        %v2366 = vadd.f32 %v2358, 1e-05
        %v2367 = vadd.f32 %v2359, 1e-05
        %v2368 = vadd.f32 %v2360, 1e-05
        %v2369 = vadd.f32 %v2361, 1e-05
        %v2370 = vadd.f32 %v2362, 1e-05
        %v2371 = vrsqrt.pop %v2363
        %v2372 = vrsqrt.pop %v2364
        %v2373 = vrsqrt.pop %v2365
        %v2374 = vrsqrt.pop %v2366
        %v2375 = vrsqrt.pop %v2367
        %v2376 = vrsqrt.pop %v2368
        %v2377 = vrsqrt.pop %v2369
        %v2378 = vrsqrt.pop %v2370
        %v2379 = vmul.f32 %v2315, %v2371
        %v2380 = vmul.f32 %v2316, %v2372
        %v2381 = vmul.f32 %v2317, %v2373
        %v2382 = vmul.f32 %v2318, %v2374
        %v2383 = vmul.f32 %v2319, %v2375
        %v2384 = vmul.f32 %v2320, %v2376
        %v2385 = vmul.f32 %v2321, %v2377
        %v2386 = vmul.f32 %v2322, %v2378
        %v2388 = vlaneseq
        %v2389 = vshrl.u32 %v2388, 7
        %v2390 = vsub.s32 0, %v2389
        %v2391 = vrot.slane %v2281, %v2390
        %v2393 = vmul.f32 %v2379, %v2391
        %v2394 = vmul.f32 %v2380, %v2391
        %v2395 = vmul.f32 %v2381, %v2391
        %v2396 = vmul.f32 %v2382, %v2391
        %v2397 = vmul.f32 %v2383, %v2391
        %v2398 = vmul.f32 %v2384, %v2391
        %v2399 = vmul.f32 %v2385, %v2391
        %v2400 = vmul.f32 %v2386, %v2391
        %v2402 = vlaneseq
        %v2403 = vshrl.u32 %v2402, 7
        %v2404 = vsub.s32 0, %v2403
        %v2405 = vrot.slane %v2282, %v2404
        %v2407 = vadd.f32 %v2393, %v2405
        %v2408 = vadd.f32 %v2394, %v2405
        %v2409 = vadd.f32 %v2395, %v2405
        %v2410 = vadd.f32 %v2396, %v2405
        %v2411 = vadd.f32 %v2397, %v2405
        %v2412 = vadd.f32 %v2398, %v2405
        %v2413 = vadd.f32 %v2399, %v2405
        %v2414 = vadd.f32 %v2400, %v2405
        %v2415 = vpack.c.bf16 %v2408, %v2407
        %v2416 = vpack.c.bf16 %v2410, %v2409
        %v2417 = vpack.c.bf16 %v2412, %v2411
        %v2418 = vpack.c.bf16 %v2414, %v2413
        %v2419 = vld [vmem:[%s9] sm:$0xf]
        %v2420 = vld [vmem:[%s9 + $0x4] sm:$0xf]
        %v2421 = vld [vmem:[%s9 + $0x8] sm:$0xf]
        %v2422 = vld [vmem:[%s9 + $0xc] sm:$0xf]
        %v2423 = vld [vmem:[%s10] sm:$0x1]
        %v2425 = vlaneseq
        %v2426 = vshrl.u32 %v2425, 7
        %v2427 = vsub.s32 0, %v2426
        %v2428 = vrot.slane %v2423, %v2427
        %v2434 = vunpack.c.l.b16 %v2419
        %v2435 = vunpack.c.l.b16 %v2420
        %v2436 = vunpack.c.l.b16 %v2421
        %v2437 = vunpack.c.l.b16 %v2422
        %v2438 = vpack.c.b16 %v2435, %v2434
        %v2439 = vpack.c.b16 %v2437, %v2436
        %v2443 = vsel %vm512, %v2415, 0
        %v2446 = vsel %vm512, %v2416, 0
        %v2449 = vsel %vm512, %v2417, 0
        %v2452 = vsel %vm512, %v2418, 0
        %2454 = vmatprep.subr.bf16.mxu0 0
        %2455 = vmatpush1.bf16.msra.mxu0 %v2438
        %2456 = vmatprep.subr.bf16.mxu0 0
        %2457 = vmatpush1.bf16.msra.mxu0 %v2439
        %2458 = vmatprep.subr.bf16.mxu0 0
        %2459 = vmatpush1.bf16.msra.mxu0 0
        %2460 = vmatprep.subr.bf16.mxu0 0
        %2461 = vmatpush1.bf16.msra.mxu0 0
        %2462 = vmatprep.subr.bf16.mxu0 0
        %2463 = vmatpush1.bf16.msra.mxu0 0
        %2464 = vmatprep.subr.bf16.mxu0 0
        %2465 = vmatpush1.bf16.msra.mxu0 0
        %2466 = vmatprep.subr.bf16.mxu0 0
        %2467 = vmatpush1.bf16.msra.mxu0 0
        %2468 = vmatprep.subr.bf16.mxu0 0
        %2469 = vmatpush1.bf16.msra.mxu0 0
        %2470 = vmatprep.subr.bf16.mxu0 0
        %2471 = vmatpush1.bf16.msra.mxu0 0
        %2472 = vmatprep.subr.bf16.mxu0 0
        %2473 = vmatpush1.bf16.msra.mxu0 0
        %2474 = vmatprep.subr.bf16.mxu0 0
        %2475 = vmatpush1.bf16.msra.mxu0 0
        %2476 = vmatprep.subr.bf16.mxu0 0
        %2477 = vmatpush1.bf16.msra.mxu0 0
        %2478 = vmatprep.subr.bf16.mxu0 0
        %2479 = vmatpush1.bf16.msra.mxu0 0
        %2480 = vmatprep.subr.bf16.mxu0 0
        %2481 = vmatpush1.bf16.msra.mxu0 0
        %2482 = vmatprep.subr.bf16.mxu0 0
        %2483 = vmatpush1.bf16.msra.mxu0 0
        %2484 = vmatprep.subr.bf16.mxu0 0
        %2485 = vmatpush1.bf16.msra.mxu0 0
        %2486 = vmatprep.mubr.bf16.mxu0 0
        %2487 = vmatmul.mubr.bf16.gmra.mrb[0].mxu0 %v2443
        %v2488 = vpop.f32.mrb[0].mxu0
        %v2489 = vadd.f32 %v2428, %v2488
        %v2490 = vpop.f32.mrb[0].mxu0
        %v2491 = vpop.f32.mrb[0].mxu0
        %v2492 = vadd.f32 %v2428, %v2491
        %v2493 = vpop.f32.mrb[0].mxu0
        %2494 = vmatprep.mubr.bf16.mxu0 0
        %2495 = vmatmul.mubr.bf16.gmra.mrb[0].mxu0 %v2446
        %v2496 = vpop.f32.mrb[0].mxu0
        %v2497 = vadd.f32 %v2428, %v2496
        %v2498 = vpop.f32.mrb[0].mxu0
        %v2499 = vpop.f32.mrb[0].mxu0
        %v2500 = vadd.f32 %v2428, %v2499
        %v2501 = vpop.f32.mrb[0].mxu0
        %2502 = vmatprep.mubr.bf16.mxu0 0
        %2503 = vmatmul.mubr.bf16.gmra.mrb[0].mxu0 %v2449
        %v2504 = vpop.f32.mrb[0].mxu0
        %v2505 = vadd.f32 %v2428, %v2504
        %v2506 = vpop.f32.mrb[0].mxu0
        %v2507 = vpop.f32.mrb[0].mxu0
        %v2508 = vadd.f32 %v2428, %v2507
        %v2509 = vpop.f32.mrb[0].mxu0
        %2510 = vmatprep.mubr.bf16.mxu0 0
        %2511 = vmatmul.mubr.bf16.gmra.mrb[0].mxu0 %v2452
        %v2512 = vpop.f32.mrb[0].mxu0
        %v2513 = vadd.f32 %v2428, %v2512
        %v2514 = vpop.f32.mrb[0].mxu0
        %v2515 = vpop.f32.mrb[0].mxu0
        %v2516 = vadd.f32 %v2428, %v2515
        %v2517 = vpop.f32.mrb[0].mxu0
        %2518 = vdwg.mxu0
        %v2519 = vmax.f32 %v2489, 0.0
        %v2520 = vmax.f32 %v2492, 0.0
        %v2521 = vmax.f32 %v2497, 0.0
        %v2522 = vmax.f32 %v2500, 0.0
        %v2523 = vmax.f32 %v2505, 0.0
        %v2524 = vmax.f32 %v2508, 0.0
        %v2525 = vmax.f32 %v2513, 0.0
        %v2526 = vmax.f32 %v2516, 0.0
        %v2527 = vpack.c.bf16 %v2520, %v2519
        %v2528 = vpack.c.bf16 %v2522, %v2521
        %v2529 = vpack.c.bf16 %v2524, %v2523
        %v2530 = vpack.c.bf16 %v2526, %v2525
        %v2531 = vld [vmem:[%s11] sm:$0xf]
        %v2532 = vld [vmem:[%s11 + $0x4] sm:$0xf]
        %v2533 = vld [vmem:[%s11 + $0x8] sm:$0xf]
        %v2534 = vld [vmem:[%s11 + $0xc] sm:$0xf]
        %v2535 = vld [vmem:[%s11 + $0x10] sm:$0xf]
        %v2536 = vld [vmem:[%s11 + $0x14] sm:$0xf]
        %v2537 = vld [vmem:[%s11 + $0x18] sm:$0xf]
        %v2538 = vld [vmem:[%s11 + $0x1c] sm:$0xf]
        %v2539 = vld [vmem:[%s11 + $0x20] sm:$0xf]
        %v2540 = vld [vmem:[%s11 + $0x24] sm:$0xf]
        %v2541 = vld [vmem:[%s11 + $0x28] sm:$0xf]
        %v2542 = vld [vmem:[%s11 + $0x2c] sm:$0xf]
        %v2543 = vld [vmem:[%s11 + $0x30] sm:$0xf]
        %v2544 = vld [vmem:[%s11 + $0x34] sm:$0xf]
        %v2545 = vld [vmem:[%s11 + $0x38] sm:$0xf]
        %v2546 = vld [vmem:[%s11 + $0x3c] sm:$0xf]
        %v2547 = vld [vmem:[%s12] sm:$0x1]
        %v2549 = vlaneseq
        %v2550 = vshrl.u32 %v2549, 7
        %v2551 = vsub.s32 0, %v2550
        %v2552 = vrot.slane %v2547, %v2551
        %v2570 = vunpack.c.l.b16 %v2531
        %v2571 = vunpack.c.l.b16 %v2532
        %v2572 = vunpack.c.l.b16 %v2533
        %v2573 = vunpack.c.l.b16 %v2534
        %v2574 = vunpack.c.l.b16 %v2535
        %v2575 = vunpack.c.l.b16 %v2536
        %v2576 = vunpack.c.l.b16 %v2537
        %v2577 = vunpack.c.l.b16 %v2538
        %v2578 = vunpack.c.l.b16 %v2539
        %v2579 = vunpack.c.l.b16 %v2540
        %v2580 = vunpack.c.l.b16 %v2541
        %v2581 = vunpack.c.l.b16 %v2542
        %v2582 = vunpack.c.l.b16 %v2543
        %v2583 = vunpack.c.l.b16 %v2544
        %v2584 = vunpack.c.l.b16 %v2545
        %v2585 = vunpack.c.l.b16 %v2546
        %v2586 = vpack.c.b16 %v2571, %v2570
        %v2587 = vpack.c.b16 %v2573, %v2572
        %v2588 = vpack.c.b16 %v2575, %v2574
        %v2589 = vpack.c.b16 %v2577, %v2576
        %v2590 = vpack.c.b16 %v2579, %v2578
        %v2591 = vpack.c.b16 %v2581, %v2580
        %v2592 = vpack.c.b16 %v2583, %v2582
        %v2593 = vpack.c.b16 %v2585, %v2584
        %2602 = vmatprep.subr.bf16.mxu0 0
        %2603 = vmatpush1.bf16.msra.mxu0 %v2586
        %2604 = vmatprep.subr.bf16.mxu0 0
        %2605 = vmatpush1.bf16.msra.mxu0 %v2587
        %2606 = vmatprep.subr.bf16.mxu0 0
        %2607 = vmatpush1.bf16.msra.mxu0 %v2588
        %2608 = vmatprep.subr.bf16.mxu0 0
        %2609 = vmatpush1.bf16.msra.mxu0 %v2589
        %2610 = vmatprep.subr.bf16.mxu0 0
        %2611 = vmatpush1.bf16.msra.mxu0 %v2590
        %2612 = vmatprep.subr.bf16.mxu0 0
        %2613 = vmatpush1.bf16.msra.mxu0 %v2591
        %2614 = vmatprep.subr.bf16.mxu0 0
        %2615 = vmatpush1.bf16.msra.mxu0 %v2592
        %2616 = vmatprep.subr.bf16.mxu0 0
        %2617 = vmatpush1.bf16.msra.mxu0 %v2593
        %2618 = vmatprep.subr.bf16.mxu0 0
        %2619 = vmatpush1.bf16.msra.mxu0 0
        %2620 = vmatprep.subr.bf16.mxu0 0
        %2621 = vmatpush1.bf16.msra.mxu0 0
        %2622 = vmatprep.subr.bf16.mxu0 0
        %2623 = vmatpush1.bf16.msra.mxu0 0
        %2624 = vmatprep.subr.bf16.mxu0 0
        %2625 = vmatpush1.bf16.msra.mxu0 0
        %2626 = vmatprep.subr.bf16.mxu0 0
        %2627 = vmatpush1.bf16.msra.mxu0 0
        %2628 = vmatprep.subr.bf16.mxu0 0
        %2629 = vmatpush1.bf16.msra.mxu0 0
        %2630 = vmatprep.subr.bf16.mxu0 0
        %2631 = vmatpush1.bf16.msra.mxu0 0
        %2632 = vmatprep.subr.bf16.mxu0 0
        %2633 = vmatpush1.bf16.msra.mxu0 0
        %2634 = vmatprep.mubr.bf16.mxu0 0
        %2635 = vmatmul.mubr.bf16.gmra.mrb[0].mxu0 %v2527
        %v2636 = vpop.f32.mrb[0].mxu0
        %v2637 = vadd.f32 %v2552, %v2636
        %v2638 = vpop.f32.mrb[0].mxu0
        %v2639 = vpop.f32.mrb[0].mxu0
        %v2640 = vadd.f32 %v2552, %v2639
        %v2641 = vpop.f32.mrb[0].mxu0
        %2642 = vmatprep.mubr.bf16.mxu0 0
        %2643 = vmatmul.mubr.bf16.gmra.mrb[0].mxu0 %v2528
        %v2644 = vpop.f32.mrb[0].mxu0
        %v2645 = vadd.f32 %v2552, %v2644
        %v2646 = vpop.f32.mrb[0].mxu0
        %v2647 = vpop.f32.mrb[0].mxu0
        %v2648 = vadd.f32 %v2552, %v2647
        %v2649 = vpop.f32.mrb[0].mxu0
        %2650 = vmatprep.mubr.bf16.mxu0 0
        %2651 = vmatmul.mubr.bf16.gmra.mrb[0].mxu0 %v2529
        %v2652 = vpop.f32.mrb[0].mxu0
        %v2653 = vadd.f32 %v2552, %v2652
        %v2654 = vpop.f32.mrb[0].mxu0
        %v2655 = vpop.f32.mrb[0].mxu0
        %v2656 = vadd.f32 %v2552, %v2655
        %v2657 = vpop.f32.mrb[0].mxu0
        %2658 = vmatprep.mubr.bf16.mxu0 0
        %2659 = vmatmul.mubr.bf16.gmra.mrb[0].mxu0 %v2530
        %v2660 = vpop.f32.mrb[0].mxu0
        %v2661 = vadd.f32 %v2552, %v2660
        %v2662 = vpop.f32.mrb[0].mxu0
        %v2663 = vpop.f32.mrb[0].mxu0
        %v2664 = vadd.f32 %v2552, %v2663
        %v2665 = vpop.f32.mrb[0].mxu0
        %2666 = vdwg.mxu0
        %v2667 = vadd.f32 %v2273, %v2637
        %v2668 = vadd.f32 %v2274, %v2640
        %v2669 = vadd.f32 %v2275, %v2645
        %v2670 = vadd.f32 %v2276, %v2648
        %v2671 = vadd.f32 %v2277, %v2653
        %v2672 = vadd.f32 %v2278, %v2656
        %v2673 = vadd.f32 %v2279, %v2661
        %v2674 = vadd.f32 %v2280, %v2664
        %2675 = vst.msk [vmem:[%s500] sm:$0xff] %vm512, %v2667
        %2676 = vst.msk [vmem:[%s500 + $0x8] sm:$0xff] %vm512, %v2668
        %2677 = vst.msk [vmem:[%s500 + $0x10] sm:$0xff] %vm512, %v2669
        %2678 = vst.msk [vmem:[%s500 + $0x18] sm:$0xff] %vm512, %v2670
        %2679 = vst.msk [vmem:[%s500 + $0x20] sm:$0xff] %vm512, %v2671
        %2680 = vst.msk [vmem:[%s500 + $0x28] sm:$0xff] %vm512, %v2672
        %2681 = vst.msk [vmem:[%s500 + $0x30] sm:$0xff] %vm512, %v2673
        %2682 = vst.msk [vmem:[%s500 + $0x38] sm:$0xff] %vm512, %v2674
        %s2683 = sand.u32 %s313, 1
        %s2684 = scalar_lea.sflag [#allocation4], %s2683
        %s2685 = sand.u32 %s313, 1
        %s2686 = smul.addr %s2685, 64
        %s2687 = scalar_lea.vmem [#allocation3], %s2686
        // Predicated region
        $region111: #{transformer_block.1} parent=105 // pred_check
          %p2688 = pneg %p323
        $region112: #{transformer_block.1} parent=105 // pred_check_branch
          %2690 = sbr.rel (%p2688) target = $region114
        $region113: #{transformer_block.1} parent=105 // pred_region
          %s2692 = ssub.s32 1024, 1024
          %2693 = vsyncadd %s2684, %s2692
          %s2694 = smul.addr %s27, 128
          %s2695 = scalar_lea.hbm %s13, %s2694
          %s2696 = sshll.u32 %s2687, 4
          %s2697 = int_to_ptr.vmem [resolvable:$true] %s2696
          %2702 = dma.vmem_to_hbm [thread:$0]  %s2697, 1024, %s2695, %s2684, 128, 256, 8
        $region114: #{transformer_block.1} parent=105 // pred_fallthru
          _
      $region106: #{transformer_block.1} parent=5 // pred_fallthru
        _
      %p2703 = scmp.le.s32.totalorder 2, %s22
      // Predicated region
      $region115: #{transformer_block.1} parent=5 // pred_check
        %p2704 = pneg %p2703
      $region116: #{transformer_block.1} parent=5 // pred_check_branch
        %2706 = sbr.rel (%p2704) target = $region118
      $region117: #{transformer_block.1} parent=5 // pred_region
        %s2707 = ssub.s32 %s22, 2
        // Predicated region
        $region119: #{transformer_block.1} parent=117 // pred_check
          %p2708 = pneg %p329
        $region120: #{transformer_block.1} parent=117 // pred_check_branch
          %2710 = sbr.rel (%p2708) target = $region122
        $region121: #{transformer_block.1} parent=117 // pred_region
          %s2711 = sand.u32 %s314, 1
          %s2712 = scalar_lea.sflag [#allocation4], %s2711
          %s2713 = sand.u32 %s314, 1
          %s2714 = smul.addr %s2713, 64
          %s2715 = scalar_lea.vmem [#allocation3], %s2714
          %2716 = dma.done %s2712, 1024
        $region122: #{transformer_block.1} parent=117 // pred_fallthru
          _
      $region118: #{transformer_block.1} parent=5 // pred_fallthru
        _
    $region6: #{transformer_block.1} parent=1 // loop_footer
      %s26 = sadd.s32 1, %s22
    $region7: #{transformer_block.1} parent=1 // loop_footer_branch
      %21 = sbr.rel target = $region3
    $region8: #{transformer_block.1} parent=1 // loop_exit
      _
    %2717 = vsyncpa [#allocation4], 1
    %s2718 = scalar_lea.sflag [#allocation4], 1
    %2719 = vsyncpa %s2718, 1

</llo_original>
